<compile_context>
chip_gen: v7x
topology: tpu7x:2x2x1
jax: 0.10.0
libtpu: 0.0.40
codegen_flags: <defaults>
</compile_context>

<pallas_src>
import jax
import jax.numpy as jnp
from jax.experimental import pallas as pl
from jax.experimental.pallas import tpu as pltpu


# ----------------------------- Pallas GRU kernel -----------------------------
def gru_kernel(x_ref, wih_ref, whh_rz_ref, whh_n_ref, bfused_ref, bhn_ref,
               out_ref, hid_ref, xg_sc):
    """Whole GRU sequence in one invocation.

    x_ref      : (S*B, H)  bf16 time-major embedded input, rows ordered (t, b)
    wih_ref    : (H, 3H)   bf16 transposed weight_ih_l0  (gate order r, z, n)
    whh_rz_ref : (H, 2H)   bf16 r/z columns of transposed weight_hh_l0
    whh_n_ref  : (H, H)    bf16 n columns of transposed weight_hh_l0
    bfused_ref : (1, 3H)   f32  b_ih + [b_hh_r, b_hh_z, 0]
    bhn_ref    : (1, H)    f32  b_hh_n (must stay inside the r * (.) term)
    out_ref    : (B, S, H) f32  GRU outputs (batch-major, like torch)
    hid_ref    : (B, H)    f32  final hidden state
    xg_sc      : (S*B, 3H) f32  scratch for the hoisted input projection
    """
    B, S, H = out_ref.shape

    # ---- Phase 1: hoisted input projection, one large bf16 MXU matmul over
    # all timesteps, f32 accumulation; biases pre-folded in the wrapper.
    xg_sc[...] = (
        jnp.dot(x_ref[...], wih_ref[...], preferred_element_type=jnp.float32)
        + bfused_ref[...]
    )

    # ---- Loop-invariant values hoisted out of the serial region: keep W_hh
    # vreg-resident (bf16) instead of re-streaming ~100 KiB of VMEM per step,
    # and do the (1,H)->(B,H) bias broadcast exactly once.
    whh_rz = whh_rz_ref[...]                               # (H, 2H) bf16
    whh_n = whh_n_ref[...]                                 # (H, H)  bf16
    bhn = jnp.broadcast_to(bhn_ref[...], (B, H))           # (B, H)  f32

    # ---- Phase 2: serial recurrence; only h @ W_hh is on the critical path.
    # S is small and static -> a Python unroll gives fully static indexing and
    # full scheduler visibility.  (For large S, switch to lax.fori_loop with a
    # modest unroll and a dynamic-index store.)
    h = jnp.zeros((B, H), jnp.float32)
    for t in range(S):
        xg = xg_sc[pl.ds(t * B, B), :]                     # (B, 3H) f32
        hb = h.astype(jnp.bfloat16)                        # bf16 only at the dot
        # r/z block and n block issued separately: the sigmoids can start
        # while the n-gate matmul is still draining.
        hg_rz = jnp.dot(hb, whh_rz, preferred_element_type=jnp.float32)
        hg_n = jnp.dot(hb, whh_n, preferred_element_type=jnp.float32)
        r = jax.nn.sigmoid(xg[:, 0 * H:1 * H] + hg_rz[:, 0 * H:1 * H])
        z = jax.nn.sigmoid(xg[:, 1 * H:2 * H] + hg_rz[:, 1 * H:2 * H])
        n = jnp.tanh(xg[:, 2 * H:3 * H] + r * (hg_n + bhn))
        h = (1.0 - z) * n + z * h
        out_ref[:, t, :] = h.astype(out_ref.dtype)         # static-index store

    hid_ref[...] = h.astype(hid_ref.dtype)                 # written once


def gru_forward(x_flat, w_ih_t, w_hh_rz_t, w_hh_n_t, b_fused, b_hh_n, S, B, H):
    """x_flat: (S*B, H) bf16 time-major embedded input. Returns ((B,S,H),(B,H))."""
    out, hid = pl.pallas_call(
        gru_kernel,
        out_shape=(jax.ShapeDtypeStruct((B, S, H), jnp.float32),
                   jax.ShapeDtypeStruct((B, H), jnp.float32)),
        grid_spec=pltpu.PrefetchScalarGridSpec(
            num_scalar_prefetch=0,
            grid=(1,),                                   # single invocation
            in_specs=[
                pl.BlockSpec((S * B, H), lambda i: (0, 0)),      # x (time-major)
                pl.BlockSpec((H, 3 * H), lambda i: (0, 0)),      # W_ih^T
                pl.BlockSpec((H, 2 * H), lambda i: (0, 0)),      # W_hh^T r/z cols
                pl.BlockSpec((H, H), lambda i: (0, 0)),          # W_hh^T n cols
                pl.BlockSpec((1, 3 * H), lambda i: (0, 0)),      # fused bias
                pl.BlockSpec((1, H), lambda i: (0, 0)),          # b_hh_n
            ],
            out_specs=[
                pl.BlockSpec((B, S, H), lambda i: (0, 0, 0)),    # outputs
                pl.BlockSpec((B, H), lambda i: (0, 0)),          # final hidden
            ],
            scratch_shapes=[pltpu.VMEM((S * B, 3 * H), jnp.float32)],
        ),
        compiler_params=pltpu.CompilerParams(
            dimension_semantics=("arbitrary",)),
    )(x_flat, w_ih_t, w_hh_rz_t, w_hh_n_t, b_fused, b_hh_n)
    return out, hid


# ----------------------------- EncoderRNN wrapper -----------------------------
def init_encoder_params(key, input_size, hidden_size):
    """Deterministic synthetic parameters (shapes match nn.Embedding / nn.GRU)."""
    k_emb, k1, k2, k3, k4 = jax.random.split(key, 5)
    scale = 1.0 / jnp.sqrt(jnp.float32(hidden_size))
    return dict(
        emb=jax.random.normal(k_emb, (input_size, hidden_size), jnp.float32),
        w_ih=jax.random.uniform(k1, (3 * hidden_size, hidden_size), jnp.float32,
                                -scale, scale),
        w_hh=jax.random.uniform(k2, (3 * hidden_size, hidden_size), jnp.float32,
                                -scale, scale),
        b_ih=jax.random.uniform(k3, (3 * hidden_size,), jnp.float32, -scale, scale),
        b_hh=jax.random.uniform(k4, (3 * hidden_size,), jnp.float32, -scale, scale),
    )


def encoder_rnn_forward(params, tokens):
    """tokens: (B, S) int32 -> (output (B, S, H), hidden (1, B, H))."""
    B, S = tokens.shape
    H = params["emb"].shape[1]

    # Time-major embedding gather: transpose only the tiny int32 token matrix,
    # not the (B,S,H) activation.  Cast to bf16 for the MXU (accumulation
    # inside the kernel stays f32).
    x_flat = params["emb"][tokens.T.reshape(-1)].astype(jnp.bfloat16)  # (S*B, H)
    # TODO(synk): nn.Dropout(0.1) is identity in eval mode; training-mode RNG dropout omitted.

    w_ih_t = jnp.transpose(params["w_ih"]).astype(jnp.bfloat16)        # (H, 3H)
    w_hh_t = jnp.transpose(params["w_hh"])                             # (H, 3H) f32
    w_hh_rz_t = w_hh_t[:, :2 * H].astype(jnp.bfloat16)                 # (H, 2H)
    w_hh_n_t = w_hh_t[:, 2 * H:].astype(jnp.bfloat16)                  # (H, H)

    b_ih, b_hh = params["b_ih"], params["b_hh"]
    # Fold biases: b_ih fully + b_hh's r/z columns into the hoisted projection;
    # keep b_hh_n separate (PyTorch GRU: n = tanh(xg_n + b_in + r*(hg_n + b_hn))).
    b_fused = (b_ih + jnp.concatenate(
        [b_hh[:H], b_hh[H:2 * H], jnp.zeros((H,), jnp.float32)]))[None, :]   # (1, 3H)
    b_hh_n = b_hh[2 * H:][None, :]                                           # (1, H)

    output, hid = gru_forward(x_flat, w_ih_t, w_hh_rz_t, w_hh_n_t,
                              b_fused, b_hh_n, S, B, H)        # (B,S,H), (B,H)
    hidden = hid[None]                                         # (1, B, H) like torch GRU
    return output, hidden


# ----------------------------- pure-JAX reference -----------------------------
def encoder_rnn_reference(params, tokens):
    embedded = params["emb"][tokens]                       # (B, S, H)
    B, S, Hd = embedded.shape
    w_ih, w_hh, b_ih, b_hh = (params["w_ih"], params["w_hh"],
                              params["b_ih"], params["b_hh"])

    def step(h, x_t):
        xg = x_t @ w_ih.T + b_ih
        hg = h @ w_hh.T + b_hh
        r = jax.nn.sigmoid(xg[:, :Hd] + hg[:, :Hd])
        z = jax.nn.sigmoid(xg[:, Hd:2 * Hd] + hg[:, Hd:2 * Hd])
        n = jnp.tanh(xg[:, 2 * Hd:] + r * hg[:, 2 * Hd:])
        h_new = (1.0 - z) * n + z * h
        return h_new, h_new

    h0 = jnp.zeros((B, Hd), jnp.float32)
    h_last, outs = jax.lax.scan(step, h0, jnp.transpose(embedded, (1, 0, 2)))
    return jnp.transpose(outs, (1, 0, 2)), h_last[None]


if __name__ == "__main__":
    VOCAB, BATCH, SEQ, HIDDEN = 32, 8, 8, 128

    key = jax.random.PRNGKey(0)
    k_params, k_tok = jax.random.split(key)
    params = init_encoder_params(k_params, VOCAB, HIDDEN)
    tokens = jax.random.randint(k_tok, (BATCH, SEQ), 0, VOCAB, dtype=jnp.int32)

    output, hidden = encoder_rnn_forward(params, tokens)
    output, hidden = jax.block_until_ready((output, hidden))

    ref_out, ref_hid = encoder_rnn_reference(params, tokens)
    assert output.shape == (BATCH, SEQ, HIDDEN)
    assert hidden.shape == (1, BATCH, HIDDEN)
    # Tolerance relaxed vs. the pure-f32 version: dot operands are bf16 on the
    # MXU (f32 accumulation), per the perf review.
    assert jnp.allclose(output, ref_out, atol=2e-2, rtol=2e-2)
    assert jnp.allclose(hidden, ref_hid, atol=2e-2, rtol=2e-2)

    print("KERNEL_OK")
</pallas_src>

<mosaic_0001>
module attributes {stable_mosaic.version = 11 : i64} {
  func.func @gru_kernel(%arg0: i32, %arg1: memref<64x128xbf16, #tpu.memory_space<vmem>>, %arg2: memref<128x384xbf16, #tpu.memory_space<vmem>>, %arg3: memref<128x256xbf16, #tpu.memory_space<vmem>>, %arg4: memref<128x128xbf16, #tpu.memory_space<vmem>>, %arg5: memref<1x384xf32, #tpu.memory_space<vmem>>, %arg6: memref<1x128xf32, #tpu.memory_space<vmem>>, %arg7: memref<8x8x128xf32, #tpu.memory_space<vmem>>, %arg8: memref<8x128xf32, #tpu.memory_space<vmem>>, %arg9: memref<64x384xf32, #tpu.memory_space<vmem>>) attributes {dimension_semantics = [#tpu.dimension_semantics<arbitrary>], iteration_bounds = array<i64: 1>, scalar_prefetch = 0 : i64, scratch_operands = 1 : i64, tpu.core_type = #tpu.core_type<tc>, window_params = [{pipeline_mode = #tpu.pipeline_mode<synchronous>, transform_indices = @transform_0, window_bounds = array<i64: 64, 128>}, {pipeline_mode = #tpu.pipeline_mode<synchronous>, transform_indices = @transform_1, window_bounds = array<i64: 128, 384>}, {pipeline_mode = #tpu.pipeline_mode<synchronous>, transform_indices = @transform_2, window_bounds = array<i64: 128, 256>}, {pipeline_mode = #tpu.pipeline_mode<synchronous>, transform_indices = @transform_3, window_bounds = array<i64: 128, 128>}, {pipeline_mode = #tpu.pipeline_mode<synchronous>, transform_indices = @transform_4, window_bounds = array<i64: 1, 384>}, {pipeline_mode = #tpu.pipeline_mode<synchronous>, transform_indices = @transform_5, window_bounds = array<i64: 1, 128>}, {pipeline_mode = #tpu.pipeline_mode<synchronous>, transform_indices = @transform_6, window_bounds = array<i64: 8, 8, 128>}, {pipeline_mode = #tpu.pipeline_mode<synchronous>, transform_indices = @transform_7, window_bounds = array<i64: 8, 128>}]} {
    %c0 = arith.constant 0 : index
    %c0_0 = arith.constant 0 : index
    %0 = vector.load %arg1[%c0, %c0_0] : memref<64x128xbf16, #tpu.memory_space<vmem>>, vector<64x128xbf16>
    %c0_1 = arith.constant 0 : index
    %c0_2 = arith.constant 0 : index
    %1 = vector.load %arg2[%c0_1, %c0_2] : memref<128x384xbf16, #tpu.memory_space<vmem>>, vector<128x384xbf16>
    %cst = arith.constant dense<0.000000e+00> : vector<64x384xf32>
    %2 = tpu.matmul %0, %1, %cst {dimension_numbers = #tpu.dot_dimension_numbers<[1], [0], [0], [1], [0, 0, 1, 1], [], []>} : vector<64x128xbf16>, vector<128x384xbf16>, vector<64x384xf32> -> vector<64x384xf32>
    %c0_3 = arith.constant 0 : index
    %c0_4 = arith.constant 0 : index
    %3 = vector.load %arg5[%c0_3, %c0_4] : memref<1x384xf32, #tpu.memory_space<vmem>>, vector<1x384xf32>
    %4 = vector.broadcast %3 : vector<1x384xf32> to vector<64x384xf32>
    %5 = arith.addf %2, %4 : vector<64x384xf32>
    %c0_5 = arith.constant 0 : index
    %c0_6 = arith.constant 0 : index
    %6 = vector.load %arg9[%c0_5, %c0_6] : memref<64x384xf32, #tpu.memory_space<vmem>>, vector<64x384xf32>
    tpu.vector_store %arg9[%c0_5, %c0_6], %5 {strides = array<i32>} : memref<64x384xf32, #tpu.memory_space<vmem>>, vector<64x384xf32>,
    %c0_7 = arith.constant 0 : index
    %c0_8 = arith.constant 0 : index
    %7 = vector.load %arg3[%c0_7, %c0_8] : memref<128x256xbf16, #tpu.memory_space<vmem>>, vector<128x256xbf16>
    %c0_9 = arith.constant 0 : index
    %c0_10 = arith.constant 0 : index
    %8 = vector.load %arg4[%c0_9, %c0_10] : memref<128x128xbf16, #tpu.memory_space<vmem>>, vector<128x128xbf16>
    %c0_11 = arith.constant 0 : index
    %c0_12 = arith.constant 0 : index
    %9 = vector.load %arg6[%c0_11, %c0_12] : memref<1x128xf32, #tpu.memory_space<vmem>>, vector<1x128xf32>
    %10 = vector.shape_cast %9 : vector<1x128xf32> to vector<1x128xf32>
    %11 = vector.broadcast %10 : vector<1x128xf32> to vector<8x128xf32>
    %cst_13 = arith.constant 0.000000e+00 : f32
    %12 = vector.broadcast %cst_13 : f32 to vector<8x128xf32>
    %c0_14 = arith.constant 0 : index
    %c0_15 = arith.constant 0 : index
    %13 = vector.load %arg9[%c0_14, %c0_15] : memref<64x384xf32, #tpu.memory_space<vmem>>, vector<8x384xf32>
    %14 = arith.truncf %12 : vector<8x128xf32> to vector<8x128xbf16>
    %cst_16 = arith.constant dense<0.000000e+00> : vector<8x256xf32>
    %15 = tpu.matmul %14, %7, %cst_16 {dimension_numbers = #tpu.dot_dimension_numbers<[1], [0], [0], [1], [0, 0, 1, 1], [], []>} : vector<8x128xbf16>, vector<128x256xbf16>, vector<8x256xf32> -> vector<8x256xf32>
    %cst_17 = arith.constant dense<0.000000e+00> : vector<8x128xf32>
    %16 = tpu.matmul %14, %8, %cst_17 {dimension_numbers = #tpu.dot_dimension_numbers<[1], [0], [0], [1], [0, 0, 1, 1], [], []>} : vector<8x128xbf16>, vector<128x128xbf16>, vector<8x128xf32> -> vector<8x128xf32>
    %17 = vector.extract_strided_slice %13 {offsets = [0, 0], sizes = [8, 128], strides = [1, 1]} : vector<8x384xf32> to vector<8x128xf32>
    %18 = vector.extract_strided_slice %15 {offsets = [0, 0], sizes = [8, 128], strides = [1, 1]} : vector<8x256xf32> to vector<8x128xf32>
    %19 = arith.addf %17, %18 : vector<8x128xf32>
    %20 = arith.negf %19 : vector<8x128xf32>
    %21 = math.exp %20 : vector<8x128xf32>
    %cst_18 = arith.constant 1.000000e+00 : f32
    %22 = vector.broadcast %cst_18 : f32 to vector<8x128xf32>
    %23 = arith.addf %22, %21 : vector<8x128xf32>
    %24 = arith.divf %22, %23 : vector<8x128xf32>
    %25 = vector.extract_strided_slice %13 {offsets = [0, 128], sizes = [8, 128], strides = [1, 1]} : vector<8x384xf32> to vector<8x128xf32>
    %26 = vector.extract_strided_slice %15 {offsets = [0, 128], sizes = [8, 128], strides = [1, 1]} : vector<8x256xf32> to vector<8x128xf32>
    %27 = arith.addf %25, %26 : vector<8x128xf32>
    %28 = arith.negf %27 : vector<8x128xf32>
    %29 = math.exp %28 : vector<8x128xf32>
    %cst_19 = arith.constant 1.000000e+00 : f32
    %30 = vector.broadcast %cst_19 : f32 to vector<8x128xf32>
    %31 = arith.addf %30, %29 : vector<8x128xf32>
    %32 = arith.divf %30, %31 : vector<8x128xf32>
    %33 = vector.extract_strided_slice %13 {offsets = [0, 256], sizes = [8, 128], strides = [1, 1]} : vector<8x384xf32> to vector<8x128xf32>
    %34 = arith.addf %16, %11 : vector<8x128xf32>
    %35 = arith.mulf %24, %34 : vector<8x128xf32>
    %36 = arith.addf %33, %35 : vector<8x128xf32>
    %37 = math.tanh %36 : vector<8x128xf32>
    %cst_20 = arith.constant 1.000000e+00 : f32
    %38 = vector.broadcast %cst_20 : f32 to vector<8x128xf32>
    %39 = arith.subf %38, %32 : vector<8x128xf32>
    %40 = arith.mulf %39, %37 : vector<8x128xf32>
    %41 = arith.mulf %32, %12 : vector<8x128xf32>
    %42 = arith.addf %40, %41 : vector<8x128xf32>
    %c0_21 = arith.constant 0 : index
    %c0_22 = arith.constant 0 : index
    %c0_23 = arith.constant 0 : index
    %43 = vector.load %arg7[%c0_21, %c0_22, %c0_23] : memref<8x8x128xf32, #tpu.memory_space<vmem>>, vector<8x1x128xf32>
    %44 = vector.shape_cast %43 : vector<8x1x128xf32> to vector<8x128xf32>
    %45 = vector.shape_cast %42 : vector<8x128xf32> to vector<8x1x128xf32>
    tpu.vector_store %arg7[%c0_21, %c0_22, %c0_23], %45 {strides = array<i32>} : memref<8x8x128xf32, #tpu.memory_space<vmem>>, vector<8x1x128xf32>,
    %c8 = arith.constant 8 : index
    %c0_24 = arith.constant 0 : index
    %46 = vector.load %arg9[%c8, %c0_24] : memref<64x384xf32, #tpu.memory_space<vmem>>, vector<8x384xf32>
    %47 = arith.truncf %42 : vector<8x128xf32> to vector<8x128xbf16>
    %cst_25 = arith.constant dense<0.000000e+00> : vector<8x256xf32>
    %48 = tpu.matmul %47, %7, %cst_25 {dimension_numbers = #tpu.dot_dimension_numbers<[1], [0], [0], [1], [0, 0, 1, 1], [], []>} : vector<8x128xbf16>, vector<128x256xbf16>, vector<8x256xf32> -> vector<8x256xf32>
    %cst_26 = arith.constant dense<0.000000e+00> : vector<8x128xf32>
    %49 = tpu.matmul %47, %8, %cst_26 {dimension_numbers = #tpu.dot_dimension_numbers<[1], [0], [0], [1], [0, 0, 1, 1], [], []>} : vector<8x128xbf16>, vector<128x128xbf16>, vector<8x128xf32> -> vector<8x128xf32>
    %50 = vector.extract_strided_slice %46 {offsets = [0, 0], sizes = [8, 128], strides = [1, 1]} : vector<8x384xf32> to vector<8x128xf32>
    %51 = vector.extract_strided_slice %48 {offsets = [0, 0], sizes = [8, 128], strides = [1, 1]} : vector<8x256xf32> to vector<8x128xf32>
    %52 = arith.addf %50, %51 : vector<8x128xf32>
    %53 = arith.negf %52 : vector<8x128xf32>
    %54 = math.exp %53 : vector<8x128xf32>
    %cst_27 = arith.constant 1.000000e+00 : f32
    %55 = vector.broadcast %cst_27 : f32 to vector<8x128xf32>
    %56 = arith.addf %55, %54 : vector<8x128xf32>
    %57 = arith.divf %55, %56 : vector<8x128xf32>
    %58 = vector.extract_strided_slice %46 {offsets = [0, 128], sizes = [8, 128], strides = [1, 1]} : vector<8x384xf32> to vector<8x128xf32>
    %59 = vector.extract_strided_slice %48 {offsets = [0, 128], sizes = [8, 128], strides = [1, 1]} : vector<8x256xf32> to vector<8x128xf32>
    %60 = arith.addf %58, %59 : vector<8x128xf32>
    %61 = arith.negf %60 : vector<8x128xf32>
    %62 = math.exp %61 : vector<8x128xf32>
    %cst_28 = arith.constant 1.000000e+00 : f32
    %63 = vector.broadcast %cst_28 : f32 to vector<8x128xf32>
    %64 = arith.addf %63, %62 : vector<8x128xf32>
    %65 = arith.divf %63, %64 : vector<8x128xf32>
    %66 = vector.extract_strided_slice %46 {offsets = [0, 256], sizes = [8, 128], strides = [1, 1]} : vector<8x384xf32> to vector<8x128xf32>
    %67 = arith.addf %49, %11 : vector<8x128xf32>
    %68 = arith.mulf %57, %67 : vector<8x128xf32>
    %69 = arith.addf %66, %68 : vector<8x128xf32>
    %70 = math.tanh %69 : vector<8x128xf32>
    %cst_29 = arith.constant 1.000000e+00 : f32
    %71 = vector.broadcast %cst_29 : f32 to vector<8x128xf32>
    %72 = arith.subf %71, %65 : vector<8x128xf32>
    %73 = arith.mulf %72, %70 : vector<8x128xf32>
    %74 = arith.mulf %65, %42 : vector<8x128xf32>
    %75 = arith.addf %73, %74 : vector<8x128xf32>
    %c0_30 = arith.constant 0 : index
    %c1 = arith.constant 1 : index
    %c0_31 = arith.constant 0 : index
    %76 = vector.load %arg7[%c0_30, %c1, %c0_31] : memref<8x8x128xf32, #tpu.memory_space<vmem>>, vector<8x1x128xf32>
    %77 = vector.shape_cast %76 : vector<8x1x128xf32> to vector<8x128xf32>
    %78 = vector.shape_cast %75 : vector<8x128xf32> to vector<8x1x128xf32>
    tpu.vector_store %arg7[%c0_30, %c1, %c0_31], %78 {strides = array<i32>} : memref<8x8x128xf32, #tpu.memory_space<vmem>>, vector<8x1x128xf32>,
    %c16 = arith.constant 16 : index
    %c0_32 = arith.constant 0 : index
    %79 = vector.load %arg9[%c16, %c0_32] : memref<64x384xf32, #tpu.memory_space<vmem>>, vector<8x384xf32>
    %80 = arith.truncf %75 : vector<8x128xf32> to vector<8x128xbf16>
    %cst_33 = arith.constant dense<0.000000e+00> : vector<8x256xf32>
    %81 = tpu.matmul %80, %7, %cst_33 {dimension_numbers = #tpu.dot_dimension_numbers<[1], [0], [0], [1], [0, 0, 1, 1], [], []>} : vector<8x128xbf16>, vector<128x256xbf16>, vector<8x256xf32> -> vector<8x256xf32>
    %cst_34 = arith.constant dense<0.000000e+00> : vector<8x128xf32>
    %82 = tpu.matmul %80, %8, %cst_34 {dimension_numbers = #tpu.dot_dimension_numbers<[1], [0], [0], [1], [0, 0, 1, 1], [], []>} : vector<8x128xbf16>, vector<128x128xbf16>, vector<8x128xf32> -> vector<8x128xf32>
    %83 = vector.extract_strided_slice %79 {offsets = [0, 0], sizes = [8, 128], strides = [1, 1]} : vector<8x384xf32> to vector<8x128xf32>
    %84 = vector.extract_strided_slice %81 {offsets = [0, 0], sizes = [8, 128], strides = [1, 1]} : vector<8x256xf32> to vector<8x128xf32>
    %85 = arith.addf %83, %84 : vector<8x128xf32>
    %86 = arith.negf %85 : vector<8x128xf32>
    %87 = math.exp %86 : vector<8x128xf32>
    %cst_35 = arith.constant 1.000000e+00 : f32
    %88 = vector.broadcast %cst_35 : f32 to vector<8x128xf32>
    %89 = arith.addf %88, %87 : vector<8x128xf32>
    %90 = arith.divf %88, %89 : vector<8x128xf32>
    %91 = vector.extract_strided_slice %79 {offsets = [0, 128], sizes = [8, 128], strides = [1, 1]} : vector<8x384xf32> to vector<8x128xf32>
    %92 = vector.extract_strided_slice %81 {offsets = [0, 128], sizes = [8, 128], strides = [1, 1]} : vector<8x256xf32> to vector<8x128xf32>
    %93 = arith.addf %91, %92 : vector<8x128xf32>
    %94 = arith.negf %93 : vector<8x128xf32>
    %95 = math.exp %94 : vector<8x128xf32>
    %cst_36 = arith.constant 1.000000e+00 : f32
    %96 = vector.broadcast %cst_36 : f32 to vector<8x128xf32>
    %97 = arith.addf %96, %95 : vector<8x128xf32>
    %98 = arith.divf %96, %97 : vector<8x128xf32>
    %99 = vector.extract_strided_slice %79 {offsets = [0, 256], sizes = [8, 128], strides = [1, 1]} : vector<8x384xf32> to vector<8x128xf32>
    %100 = arith.addf %82, %11 : vector<8x128xf32>
    %101 = arith.mulf %90, %100 : vector<8x128xf32>
    %102 = arith.addf %99, %101 : vector<8x128xf32>
    %103 = math.tanh %102 : vector<8x128xf32>
    %cst_37 = arith.constant 1.000000e+00 : f32
    %104 = vector.broadcast %cst_37 : f32 to vector<8x128xf32>
    %105 = arith.subf %104, %98 : vector<8x128xf32>
    %106 = arith.mulf %105, %103 : vector<8x128xf32>
    %107 = arith.mulf %98, %75 : vector<8x128xf32>
    %108 = arith.addf %106, %107 : vector<8x128xf32>
    %c0_38 = arith.constant 0 : index
    %c2 = arith.constant 2 : index
    %c0_39 = arith.constant 0 : index
    %109 = vector.load %arg7[%c0_38, %c2, %c0_39] : memref<8x8x128xf32, #tpu.memory_space<vmem>>, vector<8x1x128xf32>
    %110 = vector.shape_cast %109 : vector<8x1x128xf32> to vector<8x128xf32>
    %111 = vector.shape_cast %108 : vector<8x128xf32> to vector<8x1x128xf32>
    tpu.vector_store %arg7[%c0_38, %c2, %c0_39], %111 {strides = array<i32>} : memref<8x8x128xf32, #tpu.memory_space<vmem>>, vector<8x1x128xf32>,
    %c24 = arith.constant 24 : index
    %c0_40 = arith.constant 0 : index
    %112 = vector.load %arg9[%c24, %c0_40] : memref<64x384xf32, #tpu.memory_space<vmem>>, vector<8x384xf32>
    %113 = arith.truncf %108 : vector<8x128xf32> to vector<8x128xbf16>
    %cst_41 = arith.constant dense<0.000000e+00> : vector<8x256xf32>
    %114 = tpu.matmul %113, %7, %cst_41 {dimension_numbers = #tpu.dot_dimension_numbers<[1], [0], [0], [1], [0, 0, 1, 1], [], []>} : vector<8x128xbf16>, vector<128x256xbf16>, vector<8x256xf32> -> vector<8x256xf32>
    %cst_42 = arith.constant dense<0.000000e+00> : vector<8x128xf32>
    %115 = tpu.matmul %113, %8, %cst_42 {dimension_numbers = #tpu.dot_dimension_numbers<[1], [0], [0], [1], [0, 0, 1, 1], [], []>} : vector<8x128xbf16>, vector<128x128xbf16>, vector<8x128xf32> -> vector<8x128xf32>
    %116 = vector.extract_strided_slice %112 {offsets = [0, 0], sizes = [8, 128], strides = [1, 1]} : vector<8x384xf32> to vector<8x128xf32>
    %117 = vector.extract_strided_slice %114 {offsets = [0, 0], sizes = [8, 128], strides = [1, 1]} : vector<8x256xf32> to vector<8x128xf32>
    %118 = arith.addf %116, %117 : vector<8x128xf32>
    %119 = arith.negf %118 : vector<8x128xf32>
    %120 = math.exp %119 : vector<8x128xf32>
    %cst_43 = arith.constant 1.000000e+00 : f32
    %121 = vector.broadcast %cst_43 : f32 to vector<8x128xf32>
    %122 = arith.addf %121, %120 : vector<8x128xf32>
    %123 = arith.divf %121, %122 : vector<8x128xf32>
    %124 = vector.extract_strided_slice %112 {offsets = [0, 128], sizes = [8, 128], strides = [1, 1]} : vector<8x384xf32> to vector<8x128xf32>
    %125 = vector.extract_strided_slice %114 {offsets = [0, 128], sizes = [8, 128], strides = [1, 1]} : vector<8x256xf32> to vector<8x128xf32>
    %126 = arith.addf %124, %125 : vector<8x128xf32>
    %127 = arith.negf %126 : vector<8x128xf32>
    %128 = math.exp %127 : vector<8x128xf32>
    %cst_44 = arith.constant 1.000000e+00 : f32
    %129 = vector.broadcast %cst_44 : f32 to vector<8x128xf32>
    %130 = arith.addf %129, %128 : vector<8x128xf32>
    %131 = arith.divf %129, %130 : vector<8x128xf32>
    %132 = vector.extract_strided_slice %112 {offsets = [0, 256], sizes = [8, 128], strides = [1, 1]} : vector<8x384xf32> to vector<8x128xf32>
    %133 = arith.addf %115, %11 : vector<8x128xf32>
    %134 = arith.mulf %123, %133 : vector<8x128xf32>
    %135 = arith.addf %132, %134 : vector<8x128xf32>
    %136 = math.tanh %135 : vector<8x128xf32>
    %cst_45 = arith.constant 1.000000e+00 : f32
    %137 = vector.broadcast %cst_45 : f32 to vector<8x128xf32>
    %138 = arith.subf %137, %131 : vector<8x128xf32>
    %139 = arith.mulf %138, %136 : vector<8x128xf32>
    %140 = arith.mulf %131, %108 : vector<8x128xf32>
    %141 = arith.addf %139, %140 : vector<8x128xf32>
    %c0_46 = arith.constant 0 : index
    %c3 = arith.constant 3 : index
    %c0_47 = arith.constant 0 : index
    %142 = vector.load %arg7[%c0_46, %c3, %c0_47] : memref<8x8x128xf32, #tpu.memory_space<vmem>>, vector<8x1x128xf32>
    %143 = vector.shape_cast %142 : vector<8x1x128xf32> to vector<8x128xf32>
    %144 = vector.shape_cast %141 : vector<8x128xf32> to vector<8x1x128xf32>
    tpu.vector_store %arg7[%c0_46, %c3, %c0_47], %144 {strides = array<i32>} : memref<8x8x128xf32, #tpu.memory_space<vmem>>, vector<8x1x128xf32>,
    %c32 = arith.constant 32 : index
    %c0_48 = arith.constant 0 : index
    %145 = vector.load %arg9[%c32, %c0_48] : memref<64x384xf32, #tpu.memory_space<vmem>>, vector<8x384xf32>
    %146 = arith.truncf %141 : vector<8x128xf32> to vector<8x128xbf16>
    %cst_49 = arith.constant dense<0.000000e+00> : vector<8x256xf32>
    %147 = tpu.matmul %146, %7, %cst_49 {dimension_numbers = #tpu.dot_dimension_numbers<[1], [0], [0], [1], [0, 0, 1, 1], [], []>} : vector<8x128xbf16>, vector<128x256xbf16>, vector<8x256xf32> -> vector<8x256xf32>
    %cst_50 = arith.constant dense<0.000000e+00> : vector<8x128xf32>
    %148 = tpu.matmul %146, %8, %cst_50 {dimension_numbers = #tpu.dot_dimension_numbers<[1], [0], [0], [1], [0, 0, 1, 1], [], []>} : vector<8x128xbf16>, vector<128x128xbf16>, vector<8x128xf32> -> vector<8x128xf32>
    %149 = vector.extract_strided_slice %145 {offsets = [0, 0], sizes = [8, 128], strides = [1, 1]} : vector<8x384xf32> to vector<8x128xf32>
    %150 = vector.extract_strided_slice %147 {offsets = [0, 0], sizes = [8, 128], strides = [1, 1]} : vector<8x256xf32> to vector<8x128xf32>
    %151 = arith.addf %149, %150 : vector<8x128xf32>
    %152 = arith.negf %151 : vector<8x128xf32>
    %153 = math.exp %152 : vector<8x128xf32>
    %cst_51 = arith.constant 1.000000e+00 : f32
    %154 = vector.broadcast %cst_51 : f32 to vector<8x128xf32>
    %155 = arith.addf %154, %153 : vector<8x128xf32>
    %156 = arith.divf %154, %155 : vector<8x128xf32>
    %157 = vector.extract_strided_slice %145 {offsets = [0, 128], sizes = [8, 128], strides = [1, 1]} : vector<8x384xf32> to vector<8x128xf32>
    %158 = vector.extract_strided_slice %147 {offsets = [0, 128], sizes = [8, 128], strides = [1, 1]} : vector<8x256xf32> to vector<8x128xf32>
    %159 = arith.addf %157, %158 : vector<8x128xf32>
    %160 = arith.negf %159 : vector<8x128xf32>
    %161 = math.exp %160 : vector<8x128xf32>
    %cst_52 = arith.constant 1.000000e+00 : f32
    %162 = vector.broadcast %cst_52 : f32 to vector<8x128xf32>
    %163 = arith.addf %162, %161 : vector<8x128xf32>
    %164 = arith.divf %162, %163 : vector<8x128xf32>
    %165 = vector.extract_strided_slice %145 {offsets = [0, 256], sizes = [8, 128], strides = [1, 1]} : vector<8x384xf32> to vector<8x128xf32>
    %166 = arith.addf %148, %11 : vector<8x128xf32>
    %167 = arith.mulf %156, %166 : vector<8x128xf32>
    %168 = arith.addf %165, %167 : vector<8x128xf32>
    %169 = math.tanh %168 : vector<8x128xf32>
    %cst_53 = arith.constant 1.000000e+00 : f32
    %170 = vector.broadcast %cst_53 : f32 to vector<8x128xf32>
    %171 = arith.subf %170, %164 : vector<8x128xf32>
    %172 = arith.mulf %171, %169 : vector<8x128xf32>
    %173 = arith.mulf %164, %141 : vector<8x128xf32>
    %174 = arith.addf %172, %173 : vector<8x128xf32>
    %c0_54 = arith.constant 0 : index
    %c4 = arith.constant 4 : index
    %c0_55 = arith.constant 0 : index
    %175 = vector.load %arg7[%c0_54, %c4, %c0_55] : memref<8x8x128xf32, #tpu.memory_space<vmem>>, vector<8x1x128xf32>
    %176 = vector.shape_cast %175 : vector<8x1x128xf32> to vector<8x128xf32>
    %177 = vector.shape_cast %174 : vector<8x128xf32> to vector<8x1x128xf32>
    tpu.vector_store %arg7[%c0_54, %c4, %c0_55], %177 {strides = array<i32>} : memref<8x8x128xf32, #tpu.memory_space<vmem>>, vector<8x1x128xf32>,
    %c40 = arith.constant 40 : index
    %c0_56 = arith.constant 0 : index
    %178 = vector.load %arg9[%c40, %c0_56] : memref<64x384xf32, #tpu.memory_space<vmem>>, vector<8x384xf32>
    %179 = arith.truncf %174 : vector<8x128xf32> to vector<8x128xbf16>
    %cst_57 = arith.constant dense<0.000000e+00> : vector<8x256xf32>
    %180 = tpu.matmul %179, %7, %cst_57 {dimension_numbers = #tpu.dot_dimension_numbers<[1], [0], [0], [1], [0, 0, 1, 1], [], []>} : vector<8x128xbf16>, vector<128x256xbf16>, vector<8x256xf32> -> vector<8x256xf32>
    %cst_58 = arith.constant dense<0.000000e+00> : vector<8x128xf32>
    %181 = tpu.matmul %179, %8, %cst_58 {dimension_numbers = #tpu.dot_dimension_numbers<[1], [0], [0], [1], [0, 0, 1, 1], [], []>} : vector<8x128xbf16>, vector<128x128xbf16>, vector<8x128xf32> -> vector<8x128xf32>
    %182 = vector.extract_strided_slice %178 {offsets = [0, 0], sizes = [8, 128], strides = [1, 1]} : vector<8x384xf32> to vector<8x128xf32>
    %183 = vector.extract_strided_slice %180 {offsets = [0, 0], sizes = [8, 128], strides = [1, 1]} : vector<8x256xf32> to vector<8x128xf32>
    %184 = arith.addf %182, %183 : vector<8x128xf32>
    %185 = arith.negf %184 : vector<8x128xf32>
    %186 = math.exp %185 : vector<8x128xf32>
    %cst_59 = arith.constant 1.000000e+00 : f32
    %187 = vector.broadcast %cst_59 : f32 to vector<8x128xf32>
    %188 = arith.addf %187, %186 : vector<8x128xf32>
    %189 = arith.divf %187, %188 : vector<8x128xf32>
    %190 = vector.extract_strided_slice %178 {offsets = [0, 128], sizes = [8, 128], strides = [1, 1]} : vector<8x384xf32> to vector<8x128xf32>
    %191 = vector.extract_strided_slice %180 {offsets = [0, 128], sizes = [8, 128], strides = [1, 1]} : vector<8x256xf32> to vector<8x128xf32>
    %192 = arith.addf %190, %191 : vector<8x128xf32>
    %193 = arith.negf %192 : vector<8x128xf32>
    %194 = math.exp %193 : vector<8x128xf32>
    %cst_60 = arith.constant 1.000000e+00 : f32
    %195 = vector.broadcast %cst_60 : f32 to vector<8x128xf32>
    %196 = arith.addf %195, %194 : vector<8x128xf32>
    %197 = arith.divf %195, %196 : vector<8x128xf32>
    %198 = vector.extract_strided_slice %178 {offsets = [0, 256], sizes = [8, 128], strides = [1, 1]} : vector<8x384xf32> to vector<8x128xf32>
    %199 = arith.addf %181, %11 : vector<8x128xf32>
    %200 = arith.mulf %189, %199 : vector<8x128xf32>
    %201 = arith.addf %198, %200 : vector<8x128xf32>
    %202 = math.tanh %201 : vector<8x128xf32>
    %cst_61 = arith.constant 1.000000e+00 : f32
    %203 = vector.broadcast %cst_61 : f32 to vector<8x128xf32>
    %204 = arith.subf %203, %197 : vector<8x128xf32>
    %205 = arith.mulf %204, %202 : vector<8x128xf32>
    %206 = arith.mulf %197, %174 : vector<8x128xf32>
    %207 = arith.addf %205, %206 : vector<8x128xf32>
    %c0_62 = arith.constant 0 : index
    %c5 = arith.constant 5 : index
    %c0_63 = arith.constant 0 : index
    %208 = vector.load %arg7[%c0_62, %c5, %c0_63] : memref<8x8x128xf32, #tpu.memory_space<vmem>>, vector<8x1x128xf32>
    %209 = vector.shape_cast %208 : vector<8x1x128xf32> to vector<8x128xf32>
    %210 = vector.shape_cast %207 : vector<8x128xf32> to vector<8x1x128xf32>
    tpu.vector_store %arg7[%c0_62, %c5, %c0_63], %210 {strides = array<i32>} : memref<8x8x128xf32, #tpu.memory_space<vmem>>, vector<8x1x128xf32>,
    %c48 = arith.constant 48 : index
    %c0_64 = arith.constant 0 : index
    %211 = vector.load %arg9[%c48, %c0_64] : memref<64x384xf32, #tpu.memory_space<vmem>>, vector<8x384xf32>
    %212 = arith.truncf %207 : vector<8x128xf32> to vector<8x128xbf16>
    %cst_65 = arith.constant dense<0.000000e+00> : vector<8x256xf32>
    %213 = tpu.matmul %212, %7, %cst_65 {dimension_numbers = #tpu.dot_dimension_numbers<[1], [0], [0], [1], [0, 0, 1, 1], [], []>} : vector<8x128xbf16>, vector<128x256xbf16>, vector<8x256xf32> -> vector<8x256xf32>
    %cst_66 = arith.constant dense<0.000000e+00> : vector<8x128xf32>
    %214 = tpu.matmul %212, %8, %cst_66 {dimension_numbers = #tpu.dot_dimension_numbers<[1], [0], [0], [1], [0, 0, 1, 1], [], []>} : vector<8x128xbf16>, vector<128x128xbf16>, vector<8x128xf32> -> vector<8x128xf32>
    %215 = vector.extract_strided_slice %211 {offsets = [0, 0], sizes = [8, 128], strides = [1, 1]} : vector<8x384xf32> to vector<8x128xf32>
    %216 = vector.extract_strided_slice %213 {offsets = [0, 0], sizes = [8, 128], strides = [1, 1]} : vector<8x256xf32> to vector<8x128xf32>
    %217 = arith.addf %215, %216 : vector<8x128xf32>
    %218 = arith.negf %217 : vector<8x128xf32>
    %219 = math.exp %218 : vector<8x128xf32>
    %cst_67 = arith.constant 1.000000e+00 : f32
    %220 = vector.broadcast %cst_67 : f32 to vector<8x128xf32>
    %221 = arith.addf %220, %219 : vector<8x128xf32>
    %222 = arith.divf %220, %221 : vector<8x128xf32>
    %223 = vector.extract_strided_slice %211 {offsets = [0, 128], sizes = [8, 128], strides = [1, 1]} : vector<8x384xf32> to vector<8x128xf32>
    %224 = vector.extract_strided_slice %213 {offsets = [0, 128], sizes = [8, 128], strides = [1, 1]} : vector<8x256xf32> to vector<8x128xf32>
    %225 = arith.addf %223, %224 : vector<8x128xf32>
    %226 = arith.negf %225 : vector<8x128xf32>
    %227 = math.exp %226 : vector<8x128xf32>
    %cst_68 = arith.constant 1.000000e+00 : f32
    %228 = vector.broadcast %cst_68 : f32 to vector<8x128xf32>
    %229 = arith.addf %228, %227 : vector<8x128xf32>
    %230 = arith.divf %228, %229 : vector<8x128xf32>
    %231 = vector.extract_strided_slice %211 {offsets = [0, 256], sizes = [8, 128], strides = [1, 1]} : vector<8x384xf32> to vector<8x128xf32>
    %232 = arith.addf %214, %11 : vector<8x128xf32>
    %233 = arith.mulf %222, %232 : vector<8x128xf32>
    %234 = arith.addf %231, %233 : vector<8x128xf32>
    %235 = math.tanh %234 : vector<8x128xf32>
    %cst_69 = arith.constant 1.000000e+00 : f32
    %236 = vector.broadcast %cst_69 : f32 to vector<8x128xf32>
    %237 = arith.subf %236, %230 : vector<8x128xf32>
    %238 = arith.mulf %237, %235 : vector<8x128xf32>
    %239 = arith.mulf %230, %207 : vector<8x128xf32>
    %240 = arith.addf %238, %239 : vector<8x128xf32>
    %c0_70 = arith.constant 0 : index
    %c6 = arith.constant 6 : index
    %c0_71 = arith.constant 0 : index
    %241 = vector.load %arg7[%c0_70, %c6, %c0_71] : memref<8x8x128xf32, #tpu.memory_space<vmem>>, vector<8x1x128xf32>
    %242 = vector.shape_cast %241 : vector<8x1x128xf32> to vector<8x128xf32>
    %243 = vector.shape_cast %240 : vector<8x128xf32> to vector<8x1x128xf32>
    tpu.vector_store %arg7[%c0_70, %c6, %c0_71], %243 {strides = array<i32>} : memref<8x8x128xf32, #tpu.memory_space<vmem>>, vector<8x1x128xf32>,
    %c56 = arith.constant 56 : index
    %c0_72 = arith.constant 0 : index
    %244 = vector.load %arg9[%c56, %c0_72] : memref<64x384xf32, #tpu.memory_space<vmem>>, vector<8x384xf32>
    %245 = arith.truncf %240 : vector<8x128xf32> to vector<8x128xbf16>
    %cst_73 = arith.constant dense<0.000000e+00> : vector<8x256xf32>
    %246 = tpu.matmul %245, %7, %cst_73 {dimension_numbers = #tpu.dot_dimension_numbers<[1], [0], [0], [1], [0, 0, 1, 1], [], []>} : vector<8x128xbf16>, vector<128x256xbf16>, vector<8x256xf32> -> vector<8x256xf32>
    %cst_74 = arith.constant dense<0.000000e+00> : vector<8x128xf32>
    %247 = tpu.matmul %245, %8, %cst_74 {dimension_numbers = #tpu.dot_dimension_numbers<[1], [0], [0], [1], [0, 0, 1, 1], [], []>} : vector<8x128xbf16>, vector<128x128xbf16>, vector<8x128xf32> -> vector<8x128xf32>
    %248 = vector.extract_strided_slice %244 {offsets = [0, 0], sizes = [8, 128], strides = [1, 1]} : vector<8x384xf32> to vector<8x128xf32>
    %249 = vector.extract_strided_slice %246 {offsets = [0, 0], sizes = [8, 128], strides = [1, 1]} : vector<8x256xf32> to vector<8x128xf32>
    %250 = arith.addf %248, %249 : vector<8x128xf32>
    %251 = arith.negf %250 : vector<8x128xf32>
    %252 = math.exp %251 : vector<8x128xf32>
    %cst_75 = arith.constant 1.000000e+00 : f32
    %253 = vector.broadcast %cst_75 : f32 to vector<8x128xf32>
    %254 = arith.addf %253, %252 : vector<8x128xf32>
    %255 = arith.divf %253, %254 : vector<8x128xf32>
    %256 = vector.extract_strided_slice %244 {offsets = [0, 128], sizes = [8, 128], strides = [1, 1]} : vector<8x384xf32> to vector<8x128xf32>
    %257 = vector.extract_strided_slice %246 {offsets = [0, 128], sizes = [8, 128], strides = [1, 1]} : vector<8x256xf32> to vector<8x128xf32>
    %258 = arith.addf %256, %257 : vector<8x128xf32>
    %259 = arith.negf %258 : vector<8x128xf32>
    %260 = math.exp %259 : vector<8x128xf32>
    %cst_76 = arith.constant 1.000000e+00 : f32
    %261 = vector.broadcast %cst_76 : f32 to vector<8x128xf32>
    %262 = arith.addf %261, %260 : vector<8x128xf32>
    %263 = arith.divf %261, %262 : vector<8x128xf32>
    %264 = vector.extract_strided_slice %244 {offsets = [0, 256], sizes = [8, 128], strides = [1, 1]} : vector<8x384xf32> to vector<8x128xf32>
    %265 = arith.addf %247, %11 : vector<8x128xf32>
    %266 = arith.mulf %255, %265 : vector<8x128xf32>
    %267 = arith.addf %264, %266 : vector<8x128xf32>
    %268 = math.tanh %267 : vector<8x128xf32>
    %cst_77 = arith.constant 1.000000e+00 : f32
    %269 = vector.broadcast %cst_77 : f32 to vector<8x128xf32>
    %270 = arith.subf %269, %263 : vector<8x128xf32>
    %271 = arith.mulf %270, %268 : vector<8x128xf32>
    %272 = arith.mulf %263, %240 : vector<8x128xf32>
    %273 = arith.addf %271, %272 : vector<8x128xf32>
    %c0_78 = arith.constant 0 : index
    %c7 = arith.constant 7 : index
    %c0_79 = arith.constant 0 : index
    %274 = vector.load %arg7[%c0_78, %c7, %c0_79] : memref<8x8x128xf32, #tpu.memory_space<vmem>>, vector<8x1x128xf32>
    %275 = vector.shape_cast %274 : vector<8x1x128xf32> to vector<8x128xf32>
    %276 = vector.shape_cast %273 : vector<8x128xf32> to vector<8x1x128xf32>
    tpu.vector_store %arg7[%c0_78, %c7, %c0_79], %276 {strides = array<i32>} : memref<8x8x128xf32, #tpu.memory_space<vmem>>, vector<8x1x128xf32>,
    %c0_80 = arith.constant 0 : index
    %c0_81 = arith.constant 0 : index
    %277 = vector.load %arg8[%c0_80, %c0_81] : memref<8x128xf32, #tpu.memory_space<vmem>>, vector<8x128xf32>
    tpu.vector_store %arg8[%c0_80, %c0_81], %273 {strides = array<i32>} : memref<8x128xf32, #tpu.memory_space<vmem>>, vector<8x128xf32>,
    return
  }
  func.func @transform_0(%arg0: i32) -> (i32, i32) {
    %c0_i32 = arith.constant 0 : i32
    %c0_i32_0 = arith.constant 0 : i32
    %c0_i32_1 = arith.constant 0 : i32
    return %c0_i32, %c0_i32_0 : i32, i32
  }
  func.func @transform_1(%arg0: i32) -> (i32, i32) {
    %c0_i32 = arith.constant 0 : i32
    %c0_i32_0 = arith.constant 0 : i32
    %c0_i32_1 = arith.constant 0 : i32
    return %c0_i32, %c0_i32_0 : i32, i32
  }
  func.func @transform_2(%arg0: i32) -> (i32, i32) {
    %c0_i32 = arith.constant 0 : i32
    %c0_i32_0 = arith.constant 0 : i32
    %c0_i32_1 = arith.constant 0 : i32
    return %c0_i32, %c0_i32_0 : i32, i32
  }
  func.func @transform_3(%arg0: i32) -> (i32, i32) {
    %c0_i32 = arith.constant 0 : i32
    %c0_i32_0 = arith.constant 0 : i32
    %c0_i32_1 = arith.constant 0 : i32
    return %c0_i32, %c0_i32_0 : i32, i32
  }
  func.func @transform_4(%arg0: i32) -> (i32, i32) {
    %c0_i32 = arith.constant 0 : i32
    %c0_i32_0 = arith.constant 0 : i32
    %c0_i32_1 = arith.constant 0 : i32
    return %c0_i32, %c0_i32_0 : i32, i32
  }
  func.func @transform_5(%arg0: i32) -> (i32, i32) {
    %c0_i32 = arith.constant 0 : i32
    %c0_i32_0 = arith.constant 0 : i32
    %c0_i32_1 = arith.constant 0 : i32
    return %c0_i32, %c0_i32_0 : i32, i32
  }
  func.func @transform_6(%arg0: i32) -> (i32, i32, i32) {
    %c0_i32 = arith.constant 0 : i32
    %c0_i32_0 = arith.constant 0 : i32
    %c0_i32_1 = arith.constant 0 : i32
    %c0_i32_2 = arith.constant 0 : i32
    return %c0_i32, %c0_i32_0, %c0_i32_1 : i32, i32, i32
  }
  func.func @transform_7(%arg0: i32) -> (i32, i32) {
    %c0_i32 = arith.constant 0 : i32
    %c0_i32_0 = arith.constant 0 : i32
    %c0_i32_1 = arith.constant 0 : i32
    return %c0_i32, %c0_i32_0 : i32, i32
  }
}

</mosaic_0001>

<llo_original>
// kernel: tpu_custom_call.1
$region0: #{tpu_custom_call.1}
  #allocation0 [shape = 'u32[]', space=smem, size = 0x4, offset = 0x4, fixed_abs, tag = 'smem constant byte address 0x4 - core index']
  #allocation1 [shape = 'u32[144,128]{1,0:T(1,128)}', space=vmem, size = 0x12000, scoped, tag = 'internal scratch']
  #allocation2 [shape = 'f32[64,384]{1,0:T(8,128)}', space=vmem, size = 0x18000, scoped, tag = 'scratch operand']
  %s0 = inlined_call_operand.hbm [shape: bf16[64,128], index: 0, kind: input, shape index: {}]
  %s1 = inlined_call_operand.hbm [shape: bf16[128,384], index: 1, kind: input, shape index: {}]
  %s2 = inlined_call_operand.hbm [shape: bf16[128,256], index: 2, kind: input, shape index: {}]
  %s3 = inlined_call_operand.hbm [shape: bf16[128,128], index: 3, kind: input, shape index: {}]
  %s4 = inlined_call_operand.vmem [shape: f32[1,384], index: 4, kind: input, shape index: {}]
  %s5 = inlined_call_operand.vmem [shape: f32[1,128], index: 5, kind: input, shape index: {}]
  %s6 = inlined_call_operand.hbm [shape: f32[8,8,128], index: 6, kind: output, shape index: {0}]
  %s7 = inlined_call_operand.hbm [shape: f32[8,128], index: 7, kind: output, shape index: {1}]
  %8 = xla_tuple %s6, %s7
  %s9 = sld [smem:[#allocation0]]
  $region58: #{tpu_custom_call.1} parent=0
    _
  %s11 = ssub.s32 1, %s9
  %s12 = scalar_select 0, %s11, %s9
  $region1: #{tpu_custom_call.1} parent=0
    #allocation3 [shape = 'u8[16384]{0}', space=vmem, size = 0x4000, scoped, tag = 'input window, operand 0, single buffered']
    #allocation4 [shape = 's32[1]{0}', space=sflag, size = 0x4, scoped, tag = 'scoped memory for tpu_custom_call.1']
    #allocation5 [shape = 's32[1]{0}', space=sflag, size = 0x4, scoped, tag = 'scoped memory for tpu_custom_call.1']
    #allocation6 [shape = 'u8[98304]{0}', space=vmem, size = 0x18000, scoped, tag = 'input window, operand 1, single buffered']
    #allocation7 [shape = 's32[1]{0}', space=sflag, size = 0x4, scoped, tag = 'scoped memory for tpu_custom_call.1']
    #allocation8 [shape = 'u8[65536]{0}', space=vmem, size = 0x10000, scoped, tag = 'input window, operand 2, single buffered']
    #allocation9 [shape = 'u8[32768]{0}', space=vmem, size = 0x8000, scoped, tag = 'input window, operand 3, single buffered']
    #allocation10 [shape = 's32[1]{0}', space=sflag, size = 0x4, scoped, tag = 'scoped memory for tpu_custom_call.1']
    #allocation11 [shape = 'u8[32768]{0}', space=vmem, size = 0x8000, scoped, tag = 'output window, operand 0, single buffered']
    #allocation12 [shape = 'u8[4096]{0}', space=vmem, size = 0x1000, scoped, tag = 'output window, operand 1, single buffered']
    #allocation13 [shape = 's32[1]{0}', space=sflag, size = 0x4, scoped, tag = 'scoped memory for tpu_custom_call.1']
    %13 = vsyncpa [#allocation4], 0
    %14 = vsyncpa [#allocation7], 0
    %15 = vsyncpa [#allocation10], 0
    %16 = vsyncpa [#allocation5], 0
    %17 = vsyncpa [#allocation13], 0
    // Predicated region
    $region2: #{tpu_custom_call.1} parent=1 // pred_check
      _
    $region3: #{tpu_custom_call.1} parent=1 // pred_check_branch
      %19 = sbr.rel (0) target = $region5
    $region4: #{tpu_custom_call.1} parent=1 // pred_region
      %s21 = ssub.s32 512, 512
      %22 = vsyncadd [#allocation4], %s21
      %s23 = sshll.u32 [#allocation3], 4
      %s24 = int_to_ptr.vmem [resolvable:$true] %s23
      %29 = dma.hbm_to_vmem [thread:$0]  %s0, 512, %s24, [#allocation4], 64, 64, 4
    $region5: #{tpu_custom_call.1} parent=1 // pred_fallthru
      _
    // Predicated region
    $region6: #{tpu_custom_call.1} parent=1 // pred_check
      _
    $region7: #{tpu_custom_call.1} parent=1 // pred_check_branch
      %31 = sbr.rel (0) target = $region9
    $region8: #{tpu_custom_call.1} parent=1 // pred_region
      %s33 = ssub.s32 3072, 3072
      %34 = vsyncadd [#allocation7], %s33
      %s35 = sshll.u32 [#allocation6], 4
      %s36 = int_to_ptr.vmem [resolvable:$true] %s35
      %41 = dma.hbm_to_vmem [thread:$0]  %s1, 3072, %s36, [#allocation7], 192, 192, 12
    $region9: #{tpu_custom_call.1} parent=1 // pred_fallthru
      _
    // Predicated region
    $region10: #{tpu_custom_call.1} parent=1 // pred_check
      _
    $region11: #{tpu_custom_call.1} parent=1 // pred_check_branch
      %43 = sbr.rel (0) target = $region13
    $region12: #{tpu_custom_call.1} parent=1 // pred_region
      %s45 = ssub.s32 2048, 2048
      %46 = vsyncadd [#allocation7], %s45
      %s47 = sshll.u32 [#allocation8], 4
      %s48 = int_to_ptr.vmem [resolvable:$true] %s47
      %53 = dma.hbm_to_vmem [thread:$0]  %s2, 2048, %s48, [#allocation7], 128, 128, 8
    $region13: #{tpu_custom_call.1} parent=1 // pred_fallthru
      _
    // Predicated region
    $region14: #{tpu_custom_call.1} parent=1 // pred_check
      _
    $region15: #{tpu_custom_call.1} parent=1 // pred_check_branch
      %55 = sbr.rel (0) target = $region17
    $region16: #{tpu_custom_call.1} parent=1 // pred_region
      %s57 = ssub.s32 1024, 1024
      %58 = vsyncadd [#allocation10], %s57
      %s59 = sshll.u32 [#allocation9], 4
      %s60 = int_to_ptr.vmem [resolvable:$true] %s59
      %65 = dma.hbm_to_vmem [thread:$0]  %s3, 1024, %s60, [#allocation10], 64, 64, 4
    $region17: #{tpu_custom_call.1} parent=1 // pred_fallthru
      _
    // Predicated region
    $region18: #{tpu_custom_call.1} parent=1 // pred_check
      _
    $region19: #{tpu_custom_call.1} parent=1 // pred_check_branch
      %67 = sbr.rel (0) target = $region21
    $region20: #{tpu_custom_call.1} parent=1 // pred_region
      _
    $region21: #{tpu_custom_call.1} parent=1 // pred_fallthru
      _
    // Predicated region
    $region22: #{tpu_custom_call.1} parent=1 // pred_check
      _
    $region23: #{tpu_custom_call.1} parent=1 // pred_check_branch
      %69 = sbr.rel (0) target = $region25
    $region24: #{tpu_custom_call.1} parent=1 // pred_region
      _
    $region25: #{tpu_custom_call.1} parent=1 // pred_fallthru
      _
    // Predicated region
    $region26: #{tpu_custom_call.1} parent=1 // pred_check
      _
    $region27: #{tpu_custom_call.1} parent=1 // pred_check_branch
      %71 = sbr.rel (0) target = $region29
    $region28: #{tpu_custom_call.1} parent=1 // pred_region
      %72 = dma.done [#allocation4], 512
    $region29: #{tpu_custom_call.1} parent=1 // pred_fallthru
      _
    // Predicated region
    $region30: #{tpu_custom_call.1} parent=1 // pred_check
      _
    $region31: #{tpu_custom_call.1} parent=1 // pred_check_branch
      %74 = sbr.rel (0) target = $region33
    $region32: #{tpu_custom_call.1} parent=1 // pred_region
      %75 = dma.done [#allocation7], 3072
    $region33: #{tpu_custom_call.1} parent=1 // pred_fallthru
      _
    // Predicated region
    $region34: #{tpu_custom_call.1} parent=1 // pred_check
      _
    $region35: #{tpu_custom_call.1} parent=1 // pred_check_branch
      %77 = sbr.rel (0) target = $region37
    $region36: #{tpu_custom_call.1} parent=1 // pred_region
      %78 = dma.done [#allocation7], 2048
    $region37: #{tpu_custom_call.1} parent=1 // pred_fallthru
      _
    // Predicated region
    $region38: #{tpu_custom_call.1} parent=1 // pred_check
      _
    $region39: #{tpu_custom_call.1} parent=1 // pred_check_branch
      %80 = sbr.rel (0) target = $region41
    $region40: #{tpu_custom_call.1} parent=1 // pred_region
      %81 = dma.done [#allocation10], 1024
    $region41: #{tpu_custom_call.1} parent=1 // pred_fallthru
      _
    %v83 = vld [vmem:[#allocation3] sm:$0xf]
    %v84 = vld [vmem:[#allocation3 + $0x4] sm:$0xf]
    %v85 = vld [vmem:[#allocation3 + $0x8] sm:$0xf]
    %v86 = vld [vmem:[#allocation3 + $0xc] sm:$0xf]
    %v87 = vld [vmem:[#allocation3 + $0x10] sm:$0xf]
    %v88 = vld [vmem:[#allocation3 + $0x14] sm:$0xf]
    %v89 = vld [vmem:[#allocation3 + $0x18] sm:$0xf]
    %v90 = vld [vmem:[#allocation3 + $0x1c] sm:$0xf]
    %v91 = vld [vmem:[#allocation6] sm:$0xff]
    %v92 = vld [vmem:[#allocation6 + $0x8] sm:$0xf]
    %v93 = vld [vmem:[#allocation6 + $0xc] sm:$0xff]
    %v94 = vld [vmem:[#allocation6 + $0x14] sm:$0xf]
    %v95 = vld [vmem:[#allocation6 + $0x18] sm:$0xff]
    %v96 = vld [vmem:[#allocation6 + $0x20] sm:$0xf]
    %v97 = vld [vmem:[#allocation6 + $0x24] sm:$0xff]
    %v98 = vld [vmem:[#allocation6 + $0x2c] sm:$0xf]
    %v99 = vld [vmem:[#allocation6 + $0x30] sm:$0xff]
    %v100 = vld [vmem:[#allocation6 + $0x38] sm:$0xf]
    %v101 = vld [vmem:[#allocation6 + $0x3c] sm:$0xff]
    %v102 = vld [vmem:[#allocation6 + $0x44] sm:$0xf]
    %v103 = vld [vmem:[#allocation6 + $0x48] sm:$0xff]
    %v104 = vld [vmem:[#allocation6 + $0x50] sm:$0xf]
    %v105 = vld [vmem:[#allocation6 + $0x54] sm:$0xff]
    %v106 = vld [vmem:[#allocation6 + $0x5c] sm:$0xf]
    %v107 = vld [vmem:[#allocation6 + $0x60] sm:$0xff]
    %v108 = vld [vmem:[#allocation6 + $0x68] sm:$0xf]
    %v109 = vld [vmem:[#allocation6 + $0x6c] sm:$0xff]
    %v110 = vld [vmem:[#allocation6 + $0x74] sm:$0xf]
    %v111 = vld [vmem:[#allocation6 + $0x78] sm:$0xff]
    %v112 = vld [vmem:[#allocation6 + $0x80] sm:$0xf]
    %v113 = vld [vmem:[#allocation6 + $0x84] sm:$0xff]
    %v114 = vld [vmem:[#allocation6 + $0x8c] sm:$0xf]
    %v115 = vld [vmem:[#allocation6 + $0x90] sm:$0xff]
    %v116 = vld [vmem:[#allocation6 + $0x98] sm:$0xf]
    %v117 = vld [vmem:[#allocation6 + $0x9c] sm:$0xff]
    %v118 = vld [vmem:[#allocation6 + $0xa4] sm:$0xf]
    %v119 = vld [vmem:[#allocation6 + $0xa8] sm:$0xff]
    %v120 = vld [vmem:[#allocation6 + $0xb0] sm:$0xf]
    %v121 = vld [vmem:[#allocation6 + $0xb4] sm:$0xff]
    %v122 = vld [vmem:[#allocation6 + $0xbc] sm:$0xf]
    %v123 = vld [vmem:[%s4] sm:$0x7]
    %v125 = vlaneseq
    %v126 = vshrl.u32 %v125, 7
    %v127 = vsub.s32 0, %v126
    %v128 = vrot.slane %v123, %v127
    %v129 = vlaneseq
    %v130 = vshrl.u32 %v129, 7
    %v131 = vsub.s32 1, %v130
    %v132 = vrot.slane %v123, %v131
    %v133 = vlaneseq
    %v134 = vshrl.u32 %v133, 7
    %v135 = vsub.s32 2, %v134
    %v136 = vrot.slane %v123, %v135
    %v148 = vunpack.c.l.b16 %v83
    %v149 = vunpack.c.l.b16 %v84
    %v150 = vunpack.c.l.b16 %v85
    %v151 = vunpack.c.l.b16 %v86
    %v152 = vunpack.c.l.b16 %v87
    %v153 = vunpack.c.l.b16 %v88
    %v154 = vunpack.c.l.b16 %v89
    %v155 = vunpack.c.l.b16 %v90
    %v156 = vpack.c.b16 %v149, %v148
    %v157 = vpack.c.b16 %v151, %v150
    %v158 = vpack.c.b16 %v153, %v152
    %v159 = vpack.c.b16 %v155, %v154
    %v196 = vunpack.c.l.b16 %v91
    %v197 = vunpack.c.h.b16 %v91
    %v198 = vunpack.c.l.b16 %v92
    %v199 = vunpack.c.l.b16 %v93
    %v200 = vunpack.c.h.b16 %v93
    %v201 = vunpack.c.l.b16 %v94
    %v202 = vunpack.c.l.b16 %v95
    %v203 = vunpack.c.h.b16 %v95
    %v204 = vunpack.c.l.b16 %v96
    %v205 = vunpack.c.l.b16 %v97
    %v206 = vunpack.c.h.b16 %v97
    %v207 = vunpack.c.l.b16 %v98
    %v208 = vunpack.c.l.b16 %v99
    %v209 = vunpack.c.h.b16 %v99
    %v210 = vunpack.c.l.b16 %v100
    %v211 = vunpack.c.l.b16 %v101
    %v212 = vunpack.c.h.b16 %v101
    %v213 = vunpack.c.l.b16 %v102
    %v214 = vunpack.c.l.b16 %v103
    %v215 = vunpack.c.h.b16 %v103
    %v216 = vunpack.c.l.b16 %v104
    %v217 = vunpack.c.l.b16 %v105
    %v218 = vunpack.c.h.b16 %v105
    %v219 = vunpack.c.l.b16 %v106
    %v220 = vunpack.c.l.b16 %v107
    %v221 = vunpack.c.h.b16 %v107
    %v222 = vunpack.c.l.b16 %v108
    %v223 = vunpack.c.l.b16 %v109
    %v224 = vunpack.c.h.b16 %v109
    %v225 = vunpack.c.l.b16 %v110
    %v226 = vunpack.c.l.b16 %v111
    %v227 = vunpack.c.h.b16 %v111
    %v228 = vunpack.c.l.b16 %v112
    %v229 = vunpack.c.l.b16 %v113
    %v230 = vunpack.c.h.b16 %v113
    %v231 = vunpack.c.l.b16 %v114
    %v232 = vunpack.c.l.b16 %v115
    %v233 = vunpack.c.h.b16 %v115
    %v234 = vunpack.c.l.b16 %v116
    %v235 = vunpack.c.l.b16 %v117
    %v236 = vunpack.c.h.b16 %v117
    %v237 = vunpack.c.l.b16 %v118
    %v238 = vunpack.c.l.b16 %v119
    %v239 = vunpack.c.h.b16 %v119
    %v240 = vunpack.c.l.b16 %v120
    %v241 = vunpack.c.l.b16 %v121
    %v242 = vunpack.c.h.b16 %v121
    %v243 = vunpack.c.l.b16 %v122
    %v244 = vpack.c.b16 %v199, %v196
    %v245 = vpack.c.b16 %v200, %v197
    %v246 = vpack.c.b16 %v201, %v198
    %v247 = vpack.c.b16 %v205, %v202
    %v248 = vpack.c.b16 %v206, %v203
    %v249 = vpack.c.b16 %v207, %v204
    %v250 = vpack.c.b16 %v211, %v208
    %v251 = vpack.c.b16 %v212, %v209
    %v252 = vpack.c.b16 %v213, %v210
    %v253 = vpack.c.b16 %v217, %v214
    %v254 = vpack.c.b16 %v218, %v215
    %v255 = vpack.c.b16 %v219, %v216
    %v256 = vpack.c.b16 %v223, %v220
    %v257 = vpack.c.b16 %v224, %v221
    %v258 = vpack.c.b16 %v225, %v222
    %v259 = vpack.c.b16 %v229, %v226
    %v260 = vpack.c.b16 %v230, %v227
    %v261 = vpack.c.b16 %v231, %v228
    %v262 = vpack.c.b16 %v235, %v232
    %v263 = vpack.c.b16 %v236, %v233
    %v264 = vpack.c.b16 %v237, %v234
    %v265 = vpack.c.b16 %v241, %v238
    %v266 = vpack.c.b16 %v242, %v239
    %v267 = vpack.c.b16 %v243, %v240
    %292 = vmatprep.subr.bf16.mxu0 %v245
    %293 = vmatpush1.bf16.msra.mxu0 %v244
    %294 = vmatprep.subr.bf16.mxu0 %v248
    %295 = vmatpush1.bf16.msra.mxu0 %v247
    %296 = vmatprep.subr.bf16.mxu0 %v251
    %297 = vmatpush1.bf16.msra.mxu0 %v250
    %298 = vmatprep.subr.bf16.mxu0 %v254
    %299 = vmatpush1.bf16.msra.mxu0 %v253
    %300 = vmatprep.subr.bf16.mxu0 %v257
    %301 = vmatpush1.bf16.msra.mxu0 %v256
    %302 = vmatprep.subr.bf16.mxu0 %v260
    %303 = vmatpush1.bf16.msra.mxu0 %v259
    %304 = vmatprep.subr.bf16.mxu0 %v263
    %305 = vmatpush1.bf16.msra.mxu0 %v262
    %306 = vmatprep.subr.bf16.mxu0 %v266
    %307 = vmatpush1.bf16.msra.mxu0 %v265
    %308 = vmatprep.subr.bf16.mxu0 0
    %309 = vmatpush1.bf16.msra.mxu0 0
    %310 = vmatprep.subr.bf16.mxu0 0
    %311 = vmatpush1.bf16.msra.mxu0 0
    %312 = vmatprep.subr.bf16.mxu0 0
    %313 = vmatpush1.bf16.msra.mxu0 0
    %314 = vmatprep.subr.bf16.mxu0 0
    %315 = vmatpush1.bf16.msra.mxu0 0
    %316 = vmatprep.subr.bf16.mxu0 0
    %317 = vmatpush1.bf16.msra.mxu0 0
    %318 = vmatprep.subr.bf16.mxu0 0
    %319 = vmatpush1.bf16.msra.mxu0 0
    %320 = vmatprep.subr.bf16.mxu0 0
    %321 = vmatpush1.bf16.msra.mxu0 0
    %322 = vmatprep.subr.bf16.mxu0 0
    %323 = vmatpush1.bf16.msra.mxu0 0
    %324 = vmatprep.mubr.bf16.mxu0 0
    %325 = vmatmul.mubr.bf16.gmra.mrb[0].mxu0 %v156
    %v326 = vpop.f32.mrb[0].mxu0
    %v327 = vadd.f32 %v128, %v326
    %v328 = vpop.f32.mrb[0].mxu0
    %v329 = vadd.f32 %v132, %v328
    %v330 = vpop.f32.mrb[0].mxu0
    %v331 = vadd.f32 %v128, %v330
    %v332 = vpop.f32.mrb[0].mxu0
    %v333 = vadd.f32 %v132, %v332
    %334 = vmatprep.mubr.bf16.mxu0 0
    %335 = vmatmul.mubr.bf16.gmra.mrb[0].mxu0 %v157
    %v336 = vpop.f32.mrb[0].mxu0
    %v337 = vadd.f32 %v128, %v336
    %v338 = vpop.f32.mrb[0].mxu0
    %v339 = vadd.f32 %v132, %v338
    %v340 = vpop.f32.mrb[0].mxu0
    %v341 = vadd.f32 %v128, %v340
    %v342 = vpop.f32.mrb[0].mxu0
    %v343 = vadd.f32 %v132, %v342
    %344 = vmatprep.mubr.bf16.mxu0 0
    %345 = vmatmul.mubr.bf16.gmra.mrb[0].mxu0 %v158
    %v346 = vpop.f32.mrb[0].mxu0
    %v347 = vadd.f32 %v128, %v346
    %v348 = vpop.f32.mrb[0].mxu0
    %v349 = vadd.f32 %v132, %v348
    %v350 = vpop.f32.mrb[0].mxu0
    %v351 = vadd.f32 %v128, %v350
    %v352 = vpop.f32.mrb[0].mxu0
    %v353 = vadd.f32 %v132, %v352
    %354 = vmatprep.mubr.bf16.mxu0 0
    %355 = vmatmul.mubr.bf16.gmra.mrb[0].mxu0 %v159
    %v356 = vpop.f32.mrb[0].mxu0
    %v357 = vadd.f32 %v128, %v356
    %v358 = vpop.f32.mrb[0].mxu0
    %v359 = vadd.f32 %v132, %v358
    %v360 = vpop.f32.mrb[0].mxu0
    %v361 = vadd.f32 %v128, %v360
    %v362 = vpop.f32.mrb[0].mxu0
    %v363 = vadd.f32 %v132, %v362
    %364 = vdwg.mxu0
    %365 = vmatprep.subr.bf16.mxu0 0
    %366 = vmatpush1.bf16.msra.mxu0 %v246
    %367 = vmatprep.subr.bf16.mxu0 0
    %368 = vmatpush1.bf16.msra.mxu0 %v249
    %369 = vmatprep.subr.bf16.mxu0 0
    %370 = vmatpush1.bf16.msra.mxu0 %v252
    %371 = vmatprep.subr.bf16.mxu0 0
    %372 = vmatpush1.bf16.msra.mxu0 %v255
    %373 = vmatprep.subr.bf16.mxu0 0
    %374 = vmatpush1.bf16.msra.mxu0 %v258
    %375 = vmatprep.subr.bf16.mxu0 0
    %376 = vmatpush1.bf16.msra.mxu0 %v261
    %377 = vmatprep.subr.bf16.mxu0 0
    %378 = vmatpush1.bf16.msra.mxu0 %v264
    %379 = vmatprep.subr.bf16.mxu0 0
    %380 = vmatpush1.bf16.msra.mxu0 %v267
    %381 = vmatprep.subr.bf16.mxu0 0
    %382 = vmatpush1.bf16.msra.mxu0 0
    %383 = vmatprep.subr.bf16.mxu0 0
    %384 = vmatpush1.bf16.msra.mxu0 0
    %385 = vmatprep.subr.bf16.mxu0 0
    %386 = vmatpush1.bf16.msra.mxu0 0
    %387 = vmatprep.subr.bf16.mxu0 0
    %388 = vmatpush1.bf16.msra.mxu0 0
    %389 = vmatprep.subr.bf16.mxu0 0
    %390 = vmatpush1.bf16.msra.mxu0 0
    %391 = vmatprep.subr.bf16.mxu0 0
    %392 = vmatpush1.bf16.msra.mxu0 0
    %393 = vmatprep.subr.bf16.mxu0 0
    %394 = vmatpush1.bf16.msra.mxu0 0
    %395 = vmatprep.subr.bf16.mxu0 0
    %396 = vmatpush1.bf16.msra.mxu0 0
    %397 = vmatprep.mubr.bf16.mxu0 0
    %398 = vmatmul.mubr.bf16.gmra.mrb[0].mxu0 %v156
    %v399 = vpop.f32.mrb[0].mxu0
    %v400 = vadd.f32 %v136, %v399
    %v401 = vpop.f32.mrb[0].mxu0
    %v402 = vpop.f32.mrb[0].mxu0
    %v403 = vadd.f32 %v136, %v402
    %v404 = vpop.f32.mrb[0].mxu0
    %405 = vmatprep.mubr.bf16.mxu0 0
    %406 = vmatmul.mubr.bf16.gmra.mrb[0].mxu0 %v157
    %v407 = vpop.f32.mrb[0].mxu0
    %v408 = vadd.f32 %v136, %v407
    %v409 = vpop.f32.mrb[0].mxu0
    %v410 = vpop.f32.mrb[0].mxu0
    %v411 = vadd.f32 %v136, %v410
    %v412 = vpop.f32.mrb[0].mxu0
    %413 = vmatprep.mubr.bf16.mxu0 0
    %414 = vmatmul.mubr.bf16.gmra.mrb[0].mxu0 %v158
    %v415 = vpop.f32.mrb[0].mxu0
    %v416 = vadd.f32 %v136, %v415
    %v417 = vpop.f32.mrb[0].mxu0
    %v418 = vpop.f32.mrb[0].mxu0
    %v419 = vadd.f32 %v136, %v418
    %v420 = vpop.f32.mrb[0].mxu0
    %421 = vmatprep.mubr.bf16.mxu0 0
    %422 = vmatmul.mubr.bf16.gmra.mrb[0].mxu0 %v159
    %v423 = vpop.f32.mrb[0].mxu0
    %v424 = vadd.f32 %v136, %v423
    %v425 = vpop.f32.mrb[0].mxu0
    %v426 = vpop.f32.mrb[0].mxu0
    %v427 = vadd.f32 %v136, %v426
    %v428 = vpop.f32.mrb[0].mxu0
    %429 = vdwg.mxu0
    %430 = vst [vmem:[#allocation2] sm:$0xff] %v327
    %431 = vst [vmem:[#allocation2 + $0x8] sm:$0xff] %v329
    %432 = vst [vmem:[#allocation2 + $0x10] sm:$0xff] %v400
    %433 = vst [vmem:[#allocation2 + $0x18] sm:$0xff] %v331
    %434 = vst [vmem:[#allocation2 + $0x20] sm:$0xff] %v333
    %435 = vst [vmem:[#allocation2 + $0x28] sm:$0xff] %v403
    %436 = vst [vmem:[#allocation2 + $0x30] sm:$0xff] %v337
    %437 = vst [vmem:[#allocation2 + $0x38] sm:$0xff] %v339
    %438 = vst [vmem:[#allocation2 + $0x40] sm:$0xff] %v408
    %439 = vst [vmem:[#allocation2 + $0x48] sm:$0xff] %v341
    %440 = vst [vmem:[#allocation2 + $0x50] sm:$0xff] %v343
    %441 = vst [vmem:[#allocation2 + $0x58] sm:$0xff] %v411
    %442 = vst [vmem:[#allocation2 + $0x60] sm:$0xff] %v347
    %443 = vst [vmem:[#allocation2 + $0x68] sm:$0xff] %v349
    %444 = vst [vmem:[#allocation2 + $0x70] sm:$0xff] %v416
    %445 = vst [vmem:[#allocation2 + $0x78] sm:$0xff] %v351
    %446 = vst [vmem:[#allocation2 + $0x80] sm:$0xff] %v353
    %447 = vst [vmem:[#allocation2 + $0x88] sm:$0xff] %v419
    %448 = vst [vmem:[#allocation2 + $0x90] sm:$0xff] %v357
    %449 = vst [vmem:[#allocation2 + $0x98] sm:$0xff] %v359
    %450 = vst [vmem:[#allocation2 + $0xa0] sm:$0xff] %v424
    %451 = vst [vmem:[#allocation2 + $0xa8] sm:$0xff] %v361
    %452 = vst [vmem:[#allocation2 + $0xb0] sm:$0xff] %v363
    %453 = vst [vmem:[#allocation2 + $0xb8] sm:$0xff] %v427
    %v454 = vld [vmem:[#allocation8] sm:$0xff]
    %v455 = vld [vmem:[#allocation8 + $0x8] sm:$0xff]
    %v456 = vld [vmem:[#allocation8 + $0x10] sm:$0xff]
    %v457 = vld [vmem:[#allocation8 + $0x18] sm:$0xff]
    %v458 = vld [vmem:[#allocation8 + $0x20] sm:$0xff]
    %v459 = vld [vmem:[#allocation8 + $0x28] sm:$0xff]
    %v460 = vld [vmem:[#allocation8 + $0x30] sm:$0xff]
    %v461 = vld [vmem:[#allocation8 + $0x38] sm:$0xff]
    %v462 = vld [vmem:[#allocation8 + $0x40] sm:$0xff]
    %v463 = vld [vmem:[#allocation8 + $0x48] sm:$0xff]
    %v464 = vld [vmem:[#allocation8 + $0x50] sm:$0xff]
    %v465 = vld [vmem:[#allocation8 + $0x58] sm:$0xff]
    %v466 = vld [vmem:[#allocation8 + $0x60] sm:$0xff]
    %v467 = vld [vmem:[#allocation8 + $0x68] sm:$0xff]
    %v468 = vld [vmem:[#allocation8 + $0x70] sm:$0xff]
    %v469 = vld [vmem:[#allocation8 + $0x78] sm:$0xff]
    %v470 = vld [vmem:[#allocation9] sm:$0xf]
    %v471 = vld [vmem:[#allocation9 + $0x4] sm:$0xf]
    %v472 = vld [vmem:[#allocation9 + $0x8] sm:$0xf]
    %v473 = vld [vmem:[#allocation9 + $0xc] sm:$0xf]
    %v474 = vld [vmem:[#allocation9 + $0x10] sm:$0xf]
    %v475 = vld [vmem:[#allocation9 + $0x14] sm:$0xf]
    %v476 = vld [vmem:[#allocation9 + $0x18] sm:$0xf]
    %v477 = vld [vmem:[#allocation9 + $0x1c] sm:$0xf]
    %v478 = vld [vmem:[#allocation9 + $0x20] sm:$0xf]
    %v479 = vld [vmem:[#allocation9 + $0x24] sm:$0xf]
    %v480 = vld [vmem:[#allocation9 + $0x28] sm:$0xf]
    %v481 = vld [vmem:[#allocation9 + $0x2c] sm:$0xf]
    %v482 = vld [vmem:[#allocation9 + $0x30] sm:$0xf]
    %v483 = vld [vmem:[#allocation9 + $0x34] sm:$0xf]
    %v484 = vld [vmem:[#allocation9 + $0x38] sm:$0xf]
    %v485 = vld [vmem:[#allocation9 + $0x3c] sm:$0xf]
    %v486 = vld [vmem:[%s5] sm:$0x1]
    %v488 = vlaneseq
    %v489 = vshrl.u32 %v488, 7
    %v490 = vsub.s32 0, %v489
    %v491 = vrot.slane %v486, %v490
    %v493 = vld [vmem:[#allocation2] sm:$0xff]
    %v494 = vld [vmem:[#allocation2 + $0x8] sm:$0xff]
    %v495 = vld [vmem:[#allocation2 + $0x10] sm:$0xff]
    %v512 = vunpack.c.l.b16 %v454
    %v513 = vunpack.c.h.b16 %v454
    %v514 = vunpack.c.l.b16 %v455
    %v515 = vunpack.c.h.b16 %v455
    %v516 = vunpack.c.l.b16 %v456
    %v517 = vunpack.c.h.b16 %v456
    %v518 = vunpack.c.l.b16 %v457
    %v519 = vunpack.c.h.b16 %v457
    %v520 = vunpack.c.l.b16 %v458
    %v521 = vunpack.c.h.b16 %v458
    %v522 = vunpack.c.l.b16 %v459
    %v523 = vunpack.c.h.b16 %v459
    %v524 = vunpack.c.l.b16 %v460
    %v525 = vunpack.c.h.b16 %v460
    %v526 = vunpack.c.l.b16 %v461
    %v527 = vunpack.c.h.b16 %v461
    %v528 = vunpack.c.l.b16 %v462
    %v529 = vunpack.c.h.b16 %v462
    %v530 = vunpack.c.l.b16 %v463
    %v531 = vunpack.c.h.b16 %v463
    %v532 = vunpack.c.l.b16 %v464
    %v533 = vunpack.c.h.b16 %v464
    %v534 = vunpack.c.l.b16 %v465
    %v535 = vunpack.c.h.b16 %v465
    %v536 = vunpack.c.l.b16 %v466
    %v537 = vunpack.c.h.b16 %v466
    %v538 = vunpack.c.l.b16 %v467
    %v539 = vunpack.c.h.b16 %v467
    %v540 = vunpack.c.l.b16 %v468
    %v541 = vunpack.c.h.b16 %v468
    %v542 = vunpack.c.l.b16 %v469
    %v543 = vunpack.c.h.b16 %v469
    %v544 = vpack.c.b16 %v514, %v512
    %v545 = vpack.c.b16 %v515, %v513
    %v546 = vpack.c.b16 %v518, %v516
    %v547 = vpack.c.b16 %v519, %v517
    %v548 = vpack.c.b16 %v522, %v520
    %v549 = vpack.c.b16 %v523, %v521
    %v550 = vpack.c.b16 %v526, %v524
    %v551 = vpack.c.b16 %v527, %v525
    %v552 = vpack.c.b16 %v530, %v528
    %v553 = vpack.c.b16 %v531, %v529
    %v554 = vpack.c.b16 %v534, %v532
    %v555 = vpack.c.b16 %v535, %v533
    %v556 = vpack.c.b16 %v538, %v536
    %v557 = vpack.c.b16 %v539, %v537
    %v558 = vpack.c.b16 %v542, %v540
    %v559 = vpack.c.b16 %v543, %v541
    %576 = vmatprep.subr.bf16.mxu0 %v545
    %577 = vmatpush1.bf16.msra.mxu0 %v544
    %578 = vmatprep.subr.bf16.mxu0 %v547
    %579 = vmatpush1.bf16.msra.mxu0 %v546
    %580 = vmatprep.subr.bf16.mxu0 %v549
    %581 = vmatpush1.bf16.msra.mxu0 %v548
    %582 = vmatprep.subr.bf16.mxu0 %v551
    %583 = vmatpush1.bf16.msra.mxu0 %v550
    %584 = vmatprep.subr.bf16.mxu0 %v553
    %585 = vmatpush1.bf16.msra.mxu0 %v552
    %586 = vmatprep.subr.bf16.mxu0 %v555
    %587 = vmatpush1.bf16.msra.mxu0 %v554
    %588 = vmatprep.subr.bf16.mxu0 %v557
    %589 = vmatpush1.bf16.msra.mxu0 %v556
    %590 = vmatprep.subr.bf16.mxu0 %v559
    %591 = vmatpush1.bf16.msra.mxu0 %v558
    %592 = vmatprep.subr.bf16.mxu0 0
    %593 = vmatpush1.bf16.msra.mxu0 0
    %594 = vmatprep.subr.bf16.mxu0 0
    %595 = vmatpush1.bf16.msra.mxu0 0
    %596 = vmatprep.subr.bf16.mxu0 0
    %597 = vmatpush1.bf16.msra.mxu0 0
    %598 = vmatprep.subr.bf16.mxu0 0
    %599 = vmatpush1.bf16.msra.mxu0 0
    %600 = vmatprep.subr.bf16.mxu0 0
    %601 = vmatpush1.bf16.msra.mxu0 0
    %602 = vmatprep.subr.bf16.mxu0 0
    %603 = vmatpush1.bf16.msra.mxu0 0
    %604 = vmatprep.subr.bf16.mxu0 0
    %605 = vmatpush1.bf16.msra.mxu0 0
    %606 = vmatprep.subr.bf16.mxu0 0
    %607 = vmatpush1.bf16.msra.mxu0 0
    %608 = vmatprep.mubr.bf16.mxu0 0
    %609 = vmatmul.mubr.bf16.gmra.mrb[0].mxu0 0
    %v610 = vpop.f32.mrb[0].mxu0
    %v611 = vadd.f32 0.0, %v610
    %v612 = vpop.f32.mrb[0].mxu0
    %v613 = vadd.f32 0.0, %v612
    %v614 = vpop.f32.mrb[0].mxu0
    %v615 = vpop.f32.mrb[0].mxu0
    %616 = vdwg.mxu0
    %v617 = vadd.f32 %v493, %v611
    %v618 = vxor.u32 %v617, 2147483648
    %v619 = vmul.f32 %v618, 1.442695
    %v620 = vpow.pop %v619
    %v621 = vadd.f32 %v620, 1.0
    %v622 = vrcp.pop %v621
    %v623 = vmul.f32 1.0, %v622
    %v624 = vadd.f32 %v494, %v613
    %v625 = vxor.u32 %v624, 2147483648
    %v626 = vmul.f32 %v625, 1.442695
    %v627 = vpow.pop %v626
    %v628 = vadd.f32 %v627, 1.0
    %v629 = vrcp.pop %v628
    %v630 = vmul.f32 1.0, %v629
    %v647 = vunpack.c.l.b16 %v470
    %v648 = vunpack.c.l.b16 %v471
    %v649 = vunpack.c.l.b16 %v472
    %v650 = vunpack.c.l.b16 %v473
    %v651 = vunpack.c.l.b16 %v474
    %v652 = vunpack.c.l.b16 %v475
    %v653 = vunpack.c.l.b16 %v476
    %v654 = vunpack.c.l.b16 %v477
    %v655 = vunpack.c.l.b16 %v478
    %v656 = vunpack.c.l.b16 %v479
    %v657 = vunpack.c.l.b16 %v480
    %v658 = vunpack.c.l.b16 %v481
    %v659 = vunpack.c.l.b16 %v482
    %v660 = vunpack.c.l.b16 %v483
    %v661 = vunpack.c.l.b16 %v484
    %v662 = vunpack.c.l.b16 %v485
    %v663 = vpack.c.b16 %v648, %v647
    %v664 = vpack.c.b16 %v650, %v649
    %v665 = vpack.c.b16 %v652, %v651
    %v666 = vpack.c.b16 %v654, %v653
    %v667 = vpack.c.b16 %v656, %v655
    %v668 = vpack.c.b16 %v658, %v657
    %v669 = vpack.c.b16 %v660, %v659
    %v670 = vpack.c.b16 %v662, %v661
    %679 = vmatprep.subr.bf16.mxu0 0
    %680 = vmatpush1.bf16.msra.mxu0 %v663
    %681 = vmatprep.subr.bf16.mxu0 0
    %682 = vmatpush1.bf16.msra.mxu0 %v664
    %683 = vmatprep.subr.bf16.mxu0 0
    %684 = vmatpush1.bf16.msra.mxu0 %v665
    %685 = vmatprep.subr.bf16.mxu0 0
    %686 = vmatpush1.bf16.msra.mxu0 %v666
    %687 = vmatprep.subr.bf16.mxu0 0
    %688 = vmatpush1.bf16.msra.mxu0 %v667
    %689 = vmatprep.subr.bf16.mxu0 0
    %690 = vmatpush1.bf16.msra.mxu0 %v668
    %691 = vmatprep.subr.bf16.mxu0 0
    %692 = vmatpush1.bf16.msra.mxu0 %v669
    %693 = vmatprep.subr.bf16.mxu0 0
    %694 = vmatpush1.bf16.msra.mxu0 %v670
    %695 = vmatprep.subr.bf16.mxu0 0
    %696 = vmatpush1.bf16.msra.mxu0 0
    %697 = vmatprep.subr.bf16.mxu0 0
    %698 = vmatpush1.bf16.msra.mxu0 0
    %699 = vmatprep.subr.bf16.mxu0 0
    %700 = vmatpush1.bf16.msra.mxu0 0
    %701 = vmatprep.subr.bf16.mxu0 0
    %702 = vmatpush1.bf16.msra.mxu0 0
    %703 = vmatprep.subr.bf16.mxu0 0
    %704 = vmatpush1.bf16.msra.mxu0 0
    %705 = vmatprep.subr.bf16.mxu0 0
    %706 = vmatpush1.bf16.msra.mxu0 0
    %707 = vmatprep.subr.bf16.mxu0 0
    %708 = vmatpush1.bf16.msra.mxu0 0
    %709 = vmatprep.subr.bf16.mxu0 0
    %710 = vmatpush1.bf16.msra.mxu0 0
    %711 = vmatprep.mubr.bf16.mxu0 0
    %712 = vmatmul.mubr.bf16.gmra.mrb[0].mxu0 0
    %v713 = vpop.f32.mrb[0].mxu0
    %v714 = vadd.f32 %v491, %v713
    %v715 = vpop.f32.mrb[0].mxu0
    %v716 = vpop.f32.mrb[0].mxu0
    %v717 = vpop.f32.mrb[0].mxu0
    %718 = vdwg.mxu0
    %v719 = vmul.f32 %v623, %v714
    %v720 = vadd.f32 %v495, %v719
    %v721 = vtanh.pop %v720
    %v722 = vsub.f32 1.0, %v630
    %v723 = vmul.f32 %v722, %v721
    %v724 = vmul.f32 %v630, 0.0
    %v725 = vadd.f32 %v723, %v724
    %v727 = vcombine.high %v725, %v725
    %v729 = vunpack.c.l.s4 1966171168
    %v730 = vunpack.c.0.s8 %v729
    %v731 = vlaneseq
    %v732 = vshrl.u32 %v731, 7
    %v733 = vsub.s32 %v730, %v732
    %v734 = vrot.slane %v725, %v733
    %v736 = vunpack.c.l.s4 1966171168
    %v737 = vunpack.c.0.s8 %v736
    %v738 = vlaneseq
    %v739 = vshrl.u32 %v738, 7
    %v740 = vsub.s32 %v737, %v739
    %v741 = vrot.slane %v727, %v740
    %v742 = vcombine.high %v734, %v734
    %v743 = vcombine.high %v741, %v741
    %v745 = vunpack.c.l.s4 1966171168
    %v746 = vunpack.c.0.s8 %v745
    %v747 = vlaneseq
    %v748 = vshrl.u32 %v747, 7
    %v749 = vsub.s32 %v746, %v748
    %v750 = vrot.slane %v734, %v749
    %v752 = vunpack.c.l.s4 1966171168
    %v753 = vunpack.c.0.s8 %v752
    %v754 = vlaneseq
    %v755 = vshrl.u32 %v754, 7
    %v756 = vsub.s32 %v753, %v755
    %v757 = vrot.slane %v741, %v756
    %v759 = vunpack.c.l.s4 1966171168
    %v760 = vunpack.c.0.s8 %v759
    %v761 = vlaneseq
    %v762 = vshrl.u32 %v761, 7
    %v763 = vsub.s32 %v760, %v762
    %v764 = vrot.slane %v742, %v763
    %v766 = vunpack.c.l.s4 1966171168
    %v767 = vunpack.c.0.s8 %v766
    %v768 = vlaneseq
    %v769 = vshrl.u32 %v768, 7
    %v770 = vsub.s32 %v767, %v769
    %v771 = vrot.slane %v743, %v770
    %v772 = vcombine.high %v750, %v750
    %v773 = vcombine.high %v757, %v757
    %v774 = vcombine.high %v764, %v764
    %v775 = vcombine.high %v771, %v771
    %784 = vst [vmem:[#allocation11] sm:$0x1] %v750
    %785 = vst [vmem:[#allocation11 + $0x8] sm:$0x1] %v764
    %786 = vst [vmem:[#allocation11 + $0x10] sm:$0x1] %v772
    %787 = vst [vmem:[#allocation11 + $0x18] sm:$0x1] %v774
    %788 = vst [vmem:[#allocation11 + $0x20] sm:$0x1] %v757
    %789 = vst [vmem:[#allocation11 + $0x28] sm:$0x1] %v771
    %790 = vst [vmem:[#allocation11 + $0x30] sm:$0x1] %v773
    %791 = vst [vmem:[#allocation11 + $0x38] sm:$0x1] %v775
    %v792 = vld [vmem:[#allocation2 + $0x18] sm:$0xff]
    %v793 = vld [vmem:[#allocation2 + $0x20] sm:$0xff]
    %v794 = vld [vmem:[#allocation2 + $0x28] sm:$0xff]
    %v795 = vpack.c.bf16 %v725, %v725
    %796 = vmatprep.subr.bf16.mxu0 %v545
    %797 = vmatpush1.bf16.msra.mxu0 %v544
    %798 = vmatprep.subr.bf16.mxu0 %v547
    %799 = vmatpush1.bf16.msra.mxu0 %v546
    %800 = vmatprep.subr.bf16.mxu0 %v549
    %801 = vmatpush1.bf16.msra.mxu0 %v548
    %802 = vmatprep.subr.bf16.mxu0 %v551
    %803 = vmatpush1.bf16.msra.mxu0 %v550
    %804 = vmatprep.subr.bf16.mxu0 %v553
    %805 = vmatpush1.bf16.msra.mxu0 %v552
    %806 = vmatprep.subr.bf16.mxu0 %v555
    %807 = vmatpush1.bf16.msra.mxu0 %v554
    %808 = vmatprep.subr.bf16.mxu0 %v557
    %809 = vmatpush1.bf16.msra.mxu0 %v556
    %810 = vmatprep.subr.bf16.mxu0 %v559
    %811 = vmatpush1.bf16.msra.mxu0 %v558
    %812 = vmatprep.subr.bf16.mxu0 0
    %813 = vmatpush1.bf16.msra.mxu0 0
    %814 = vmatprep.subr.bf16.mxu0 0
    %815 = vmatpush1.bf16.msra.mxu0 0
    %816 = vmatprep.subr.bf16.mxu0 0
    %817 = vmatpush1.bf16.msra.mxu0 0
    %818 = vmatprep.subr.bf16.mxu0 0
    %819 = vmatpush1.bf16.msra.mxu0 0
    %820 = vmatprep.subr.bf16.mxu0 0
    %821 = vmatpush1.bf16.msra.mxu0 0
    %822 = vmatprep.subr.bf16.mxu0 0
    %823 = vmatpush1.bf16.msra.mxu0 0
    %824 = vmatprep.subr.bf16.mxu0 0
    %825 = vmatpush1.bf16.msra.mxu0 0
    %826 = vmatprep.subr.bf16.mxu0 0
    %827 = vmatpush1.bf16.msra.mxu0 0
    %828 = vmatprep.mubr.bf16.mxu0 0
    %829 = vmatmul.mubr.bf16.gmra.mrb[0].mxu0 %v795
    %v830 = vpop.f32.mrb[0].mxu0
    %v831 = vadd.f32 0.0, %v830
    %v832 = vpop.f32.mrb[0].mxu0
    %v833 = vadd.f32 0.0, %v832
    %v834 = vpop.f32.mrb[0].mxu0
    %v835 = vpop.f32.mrb[0].mxu0
    %836 = vdwg.mxu0
    %v837 = vadd.f32 %v792, %v831
    %v838 = vxor.u32 %v837, 2147483648
    %v839 = vmul.f32 %v838, 1.442695
    %v840 = vpow.pop %v839
    %v841 = vadd.f32 %v840, 1.0
    %v842 = vrcp.pop %v841
    %v843 = vmul.f32 1.0, %v842
    %v844 = vadd.f32 %v793, %v833
    %v845 = vxor.u32 %v844, 2147483648
    %v846 = vmul.f32 %v845, 1.442695
    %v847 = vpow.pop %v846
    %v848 = vadd.f32 %v847, 1.0
    %v849 = vrcp.pop %v848
    %v850 = vmul.f32 1.0, %v849
    %851 = vmatprep.subr.bf16.mxu0 0
    %852 = vmatpush1.bf16.msra.mxu0 %v663
    %853 = vmatprep.subr.bf16.mxu0 0
    %854 = vmatpush1.bf16.msra.mxu0 %v664
    %855 = vmatprep.subr.bf16.mxu0 0
    %856 = vmatpush1.bf16.msra.mxu0 %v665
    %857 = vmatprep.subr.bf16.mxu0 0
    %858 = vmatpush1.bf16.msra.mxu0 %v666
    %859 = vmatprep.subr.bf16.mxu0 0
    %860 = vmatpush1.bf16.msra.mxu0 %v667
    %861 = vmatprep.subr.bf16.mxu0 0
    %862 = vmatpush1.bf16.msra.mxu0 %v668
    %863 = vmatprep.subr.bf16.mxu0 0
    %864 = vmatpush1.bf16.msra.mxu0 %v669
    %865 = vmatprep.subr.bf16.mxu0 0
    %866 = vmatpush1.bf16.msra.mxu0 %v670
    %867 = vmatprep.subr.bf16.mxu0 0
    %868 = vmatpush1.bf16.msra.mxu0 0
    %869 = vmatprep.subr.bf16.mxu0 0
    %870 = vmatpush1.bf16.msra.mxu0 0
    %871 = vmatprep.subr.bf16.mxu0 0
    %872 = vmatpush1.bf16.msra.mxu0 0
    %873 = vmatprep.subr.bf16.mxu0 0
    %874 = vmatpush1.bf16.msra.mxu0 0
    %875 = vmatprep.subr.bf16.mxu0 0
    %876 = vmatpush1.bf16.msra.mxu0 0
    %877 = vmatprep.subr.bf16.mxu0 0
    %878 = vmatpush1.bf16.msra.mxu0 0
    %879 = vmatprep.subr.bf16.mxu0 0
    %880 = vmatpush1.bf16.msra.mxu0 0
    %881 = vmatprep.subr.bf16.mxu0 0
    %882 = vmatpush1.bf16.msra.mxu0 0
    %883 = vmatprep.mubr.bf16.mxu0 0
    %884 = vmatmul.mubr.bf16.gmra.mrb[0].mxu0 %v795
    %v885 = vpop.f32.mrb[0].mxu0
    %v886 = vadd.f32 %v491, %v885
    %v887 = vpop.f32.mrb[0].mxu0
    %v888 = vpop.f32.mrb[0].mxu0
    %v889 = vpop.f32.mrb[0].mxu0
    %890 = vdwg.mxu0
    %v891 = vmul.f32 %v843, %v886
    %v892 = vadd.f32 %v794, %v891
    %v893 = vtanh.pop %v892
    %v894 = vsub.f32 1.0, %v850
    %v895 = vmul.f32 %v894, %v893
    %v896 = vmul.f32 %v850, %v725
    %v897 = vadd.f32 %v895, %v896
    %v899 = vcombine.high %v897, %v897
    %v901 = vunpack.c.l.s4 1966171168
    %v902 = vunpack.c.0.s8 %v901
    %v903 = vlaneseq
    %v904 = vshrl.u32 %v903, 7
    %v905 = vsub.s32 %v902, %v904
    %v906 = vrot.slane %v897, %v905
    %v908 = vunpack.c.l.s4 1966171168
    %v909 = vunpack.c.0.s8 %v908
    %v910 = vlaneseq
    %v911 = vshrl.u32 %v910, 7
    %v912 = vsub.s32 %v909, %v911
    %v913 = vrot.slane %v899, %v912
    %v914 = vcombine.high %v906, %v906
    %v915 = vcombine.high %v913, %v913
    %v917 = vunpack.c.l.s4 1966171168
    %v918 = vunpack.c.0.s8 %v917
    %v919 = vlaneseq
    %v920 = vshrl.u32 %v919, 7
    %v921 = vsub.s32 %v918, %v920
    %v922 = vrot.slane %v906, %v921
    %v924 = vunpack.c.l.s4 1966171168
    %v925 = vunpack.c.0.s8 %v924
    %v926 = vlaneseq
    %v927 = vshrl.u32 %v926, 7
    %v928 = vsub.s32 %v925, %v927
    %v929 = vrot.slane %v913, %v928
    %v931 = vunpack.c.l.s4 1966171168
    %v932 = vunpack.c.0.s8 %v931
    %v933 = vlaneseq
    %v934 = vshrl.u32 %v933, 7
    %v935 = vsub.s32 %v932, %v934
    %v936 = vrot.slane %v914, %v935
    %v938 = vunpack.c.l.s4 1966171168
    %v939 = vunpack.c.0.s8 %v938
    %v940 = vlaneseq
    %v941 = vshrl.u32 %v940, 7
    %v942 = vsub.s32 %v939, %v941
    %v943 = vrot.slane %v915, %v942
    %v944 = vcombine.high %v922, %v922
    %v945 = vcombine.high %v929, %v929
    %v946 = vcombine.high %v936, %v936
    %v947 = vcombine.high %v943, %v943
    %956 = vst [vmem:[#allocation11 + $0x1] sm:$0x1] %v922
    %957 = vst [vmem:[#allocation11 + $0x9] sm:$0x1] %v936
    %958 = vst [vmem:[#allocation11 + $0x11] sm:$0x1] %v944
    %959 = vst [vmem:[#allocation11 + $0x19] sm:$0x1] %v946
    %960 = vst [vmem:[#allocation11 + $0x21] sm:$0x1] %v929
    %961 = vst [vmem:[#allocation11 + $0x29] sm:$0x1] %v943
    %962 = vst [vmem:[#allocation11 + $0x31] sm:$0x1] %v945
    %963 = vst [vmem:[#allocation11 + $0x39] sm:$0x1] %v947
    %v964 = vld [vmem:[#allocation2 + $0x30] sm:$0xff]
    %v965 = vld [vmem:[#allocation2 + $0x38] sm:$0xff]
    %v966 = vld [vmem:[#allocation2 + $0x40] sm:$0xff]
    %v967 = vpack.c.bf16 %v897, %v897
    %968 = vmatprep.subr.bf16.mxu0 %v545
    %969 = vmatpush1.bf16.msra.mxu0 %v544
    %970 = vmatprep.subr.bf16.mxu0 %v547
    %971 = vmatpush1.bf16.msra.mxu0 %v546
    %972 = vmatprep.subr.bf16.mxu0 %v549
    %973 = vmatpush1.bf16.msra.mxu0 %v548
    %974 = vmatprep.subr.bf16.mxu0 %v551
    %975 = vmatpush1.bf16.msra.mxu0 %v550
    %976 = vmatprep.subr.bf16.mxu0 %v553
    %977 = vmatpush1.bf16.msra.mxu0 %v552
    %978 = vmatprep.subr.bf16.mxu0 %v555
    %979 = vmatpush1.bf16.msra.mxu0 %v554
    %980 = vmatprep.subr.bf16.mxu0 %v557
    %981 = vmatpush1.bf16.msra.mxu0 %v556
    %982 = vmatprep.subr.bf16.mxu0 %v559
    %983 = vmatpush1.bf16.msra.mxu0 %v558
    %984 = vmatprep.subr.bf16.mxu0 0
    %985 = vmatpush1.bf16.msra.mxu0 0
    %986 = vmatprep.subr.bf16.mxu0 0
    %987 = vmatpush1.bf16.msra.mxu0 0
    %988 = vmatprep.subr.bf16.mxu0 0
    %989 = vmatpush1.bf16.msra.mxu0 0
    %990 = vmatprep.subr.bf16.mxu0 0
    %991 = vmatpush1.bf16.msra.mxu0 0
    %992 = vmatprep.subr.bf16.mxu0 0
    %993 = vmatpush1.bf16.msra.mxu0 0
    %994 = vmatprep.subr.bf16.mxu0 0
    %995 = vmatpush1.bf16.msra.mxu0 0
    %996 = vmatprep.subr.bf16.mxu0 0
    %997 = vmatpush1.bf16.msra.mxu0 0
    %998 = vmatprep.subr.bf16.mxu0 0
    %999 = vmatpush1.bf16.msra.mxu0 0
    %1000 = vmatprep.mubr.bf16.mxu0 0
    %1001 = vmatmul.mubr.bf16.gmra.mrb[0].mxu0 %v967
    %v1002 = vpop.f32.mrb[0].mxu0
    %v1003 = vadd.f32 0.0, %v1002
    %v1004 = vpop.f32.mrb[0].mxu0
    %v1005 = vadd.f32 0.0, %v1004
    %v1006 = vpop.f32.mrb[0].mxu0
    %v1007 = vpop.f32.mrb[0].mxu0
    %1008 = vdwg.mxu0
    %v1009 = vadd.f32 %v964, %v1003
    %v1010 = vxor.u32 %v1009, 2147483648
    %v1011 = vmul.f32 %v1010, 1.442695
    %v1012 = vpow.pop %v1011
    %v1013 = vadd.f32 %v1012, 1.0
    %v1014 = vrcp.pop %v1013
    %v1015 = vmul.f32 1.0, %v1014
    %v1016 = vadd.f32 %v965, %v1005
    %v1017 = vxor.u32 %v1016, 2147483648
    %v1018 = vmul.f32 %v1017, 1.442695
    %v1019 = vpow.pop %v1018
    %v1020 = vadd.f32 %v1019, 1.0
    %v1021 = vrcp.pop %v1020
    %v1022 = vmul.f32 1.0, %v1021
    %1023 = vmatprep.subr.bf16.mxu0 0
    %1024 = vmatpush1.bf16.msra.mxu0 %v663
    %1025 = vmatprep.subr.bf16.mxu0 0
    %1026 = vmatpush1.bf16.msra.mxu0 %v664
    %1027 = vmatprep.subr.bf16.mxu0 0
    %1028 = vmatpush1.bf16.msra.mxu0 %v665
    %1029 = vmatprep.subr.bf16.mxu0 0
    %1030 = vmatpush1.bf16.msra.mxu0 %v666
    %1031 = vmatprep.subr.bf16.mxu0 0
    %1032 = vmatpush1.bf16.msra.mxu0 %v667
    %1033 = vmatprep.subr.bf16.mxu0 0
    %1034 = vmatpush1.bf16.msra.mxu0 %v668
    %1035 = vmatprep.subr.bf16.mxu0 0
    %1036 = vmatpush1.bf16.msra.mxu0 %v669
    %1037 = vmatprep.subr.bf16.mxu0 0
    %1038 = vmatpush1.bf16.msra.mxu0 %v670
    %1039 = vmatprep.subr.bf16.mxu0 0
    %1040 = vmatpush1.bf16.msra.mxu0 0
    %1041 = vmatprep.subr.bf16.mxu0 0
    %1042 = vmatpush1.bf16.msra.mxu0 0
    %1043 = vmatprep.subr.bf16.mxu0 0
    %1044 = vmatpush1.bf16.msra.mxu0 0
    %1045 = vmatprep.subr.bf16.mxu0 0
    %1046 = vmatpush1.bf16.msra.mxu0 0
    %1047 = vmatprep.subr.bf16.mxu0 0
    %1048 = vmatpush1.bf16.msra.mxu0 0
    %1049 = vmatprep.subr.bf16.mxu0 0
    %1050 = vmatpush1.bf16.msra.mxu0 0
    %1051 = vmatprep.subr.bf16.mxu0 0
    %1052 = vmatpush1.bf16.msra.mxu0 0
    %1053 = vmatprep.subr.bf16.mxu0 0
    %1054 = vmatpush1.bf16.msra.mxu0 0
    %1055 = vmatprep.mubr.bf16.mxu0 0
    %1056 = vmatmul.mubr.bf16.gmra.mrb[0].mxu0 %v967
    %v1057 = vpop.f32.mrb[0].mxu0
    %v1058 = vadd.f32 %v491, %v1057
    %v1059 = vpop.f32.mrb[0].mxu0
    %v1060 = vpop.f32.mrb[0].mxu0
    %v1061 = vpop.f32.mrb[0].mxu0
    %1062 = vdwg.mxu0
    %v1063 = vmul.f32 %v1015, %v1058
    %v1064 = vadd.f32 %v966, %v1063
    %v1065 = vtanh.pop %v1064
    %v1066 = vsub.f32 1.0, %v1022
    %v1067 = vmul.f32 %v1066, %v1065
    %v1068 = vmul.f32 %v1022, %v897
    %v1069 = vadd.f32 %v1067, %v1068
    %v1071 = vcombine.high %v1069, %v1069
    %v1073 = vunpack.c.l.s4 1966171168
    %v1074 = vunpack.c.0.s8 %v1073
    %v1075 = vlaneseq
    %v1076 = vshrl.u32 %v1075, 7
    %v1077 = vsub.s32 %v1074, %v1076
    %v1078 = vrot.slane %v1069, %v1077
    %v1080 = vunpack.c.l.s4 1966171168
    %v1081 = vunpack.c.0.s8 %v1080
    %v1082 = vlaneseq
    %v1083 = vshrl.u32 %v1082, 7
    %v1084 = vsub.s32 %v1081, %v1083
    %v1085 = vrot.slane %v1071, %v1084
    %v1086 = vcombine.high %v1078, %v1078
    %v1087 = vcombine.high %v1085, %v1085
    %v1089 = vunpack.c.l.s4 1966171168
    %v1090 = vunpack.c.0.s8 %v1089
    %v1091 = vlaneseq
    %v1092 = vshrl.u32 %v1091, 7
    %v1093 = vsub.s32 %v1090, %v1092
    %v1094 = vrot.slane %v1078, %v1093
    %v1096 = vunpack.c.l.s4 1966171168
    %v1097 = vunpack.c.0.s8 %v1096
    %v1098 = vlaneseq
    %v1099 = vshrl.u32 %v1098, 7
    %v1100 = vsub.s32 %v1097, %v1099
    %v1101 = vrot.slane %v1085, %v1100
    %v1103 = vunpack.c.l.s4 1966171168
    %v1104 = vunpack.c.0.s8 %v1103
    %v1105 = vlaneseq
    %v1106 = vshrl.u32 %v1105, 7
    %v1107 = vsub.s32 %v1104, %v1106
    %v1108 = vrot.slane %v1086, %v1107
    %v1110 = vunpack.c.l.s4 1966171168
    %v1111 = vunpack.c.0.s8 %v1110
    %v1112 = vlaneseq
    %v1113 = vshrl.u32 %v1112, 7
    %v1114 = vsub.s32 %v1111, %v1113
    %v1115 = vrot.slane %v1087, %v1114
    %v1116 = vcombine.high %v1094, %v1094
    %v1117 = vcombine.high %v1101, %v1101
    %v1118 = vcombine.high %v1108, %v1108
    %v1119 = vcombine.high %v1115, %v1115
    %1128 = vst [vmem:[#allocation11 + $0x2] sm:$0x1] %v1094
    %1129 = vst [vmem:[#allocation11 + $0xa] sm:$0x1] %v1108
    %1130 = vst [vmem:[#allocation11 + $0x12] sm:$0x1] %v1116
    %1131 = vst [vmem:[#allocation11 + $0x1a] sm:$0x1] %v1118
    %1132 = vst [vmem:[#allocation11 + $0x22] sm:$0x1] %v1101
    %1133 = vst [vmem:[#allocation11 + $0x2a] sm:$0x1] %v1115
    %1134 = vst [vmem:[#allocation11 + $0x32] sm:$0x1] %v1117
    %1135 = vst [vmem:[#allocation11 + $0x3a] sm:$0x1] %v1119
    %v1136 = vld [vmem:[#allocation2 + $0x48] sm:$0xff]
    %v1137 = vld [vmem:[#allocation2 + $0x50] sm:$0xff]
    %v1138 = vld [vmem:[#allocation2 + $0x58] sm:$0xff]
    %v1139 = vpack.c.bf16 %v1069, %v1069
    %1140 = vmatprep.subr.bf16.mxu0 %v545
    %1141 = vmatpush1.bf16.msra.mxu0 %v544
    %1142 = vmatprep.subr.bf16.mxu0 %v547
    %1143 = vmatpush1.bf16.msra.mxu0 %v546
    %1144 = vmatprep.subr.bf16.mxu0 %v549
    %1145 = vmatpush1.bf16.msra.mxu0 %v548
    %1146 = vmatprep.subr.bf16.mxu0 %v551
    %1147 = vmatpush1.bf16.msra.mxu0 %v550
    %1148 = vmatprep.subr.bf16.mxu0 %v553
    %1149 = vmatpush1.bf16.msra.mxu0 %v552
    %1150 = vmatprep.subr.bf16.mxu0 %v555
    %1151 = vmatpush1.bf16.msra.mxu0 %v554
    %1152 = vmatprep.subr.bf16.mxu0 %v557
    %1153 = vmatpush1.bf16.msra.mxu0 %v556
    %1154 = vmatprep.subr.bf16.mxu0 %v559
    %1155 = vmatpush1.bf16.msra.mxu0 %v558
    %1156 = vmatprep.subr.bf16.mxu0 0
    %1157 = vmatpush1.bf16.msra.mxu0 0
    %1158 = vmatprep.subr.bf16.mxu0 0
    %1159 = vmatpush1.bf16.msra.mxu0 0
    %1160 = vmatprep.subr.bf16.mxu0 0
    %1161 = vmatpush1.bf16.msra.mxu0 0
    %1162 = vmatprep.subr.bf16.mxu0 0
    %1163 = vmatpush1.bf16.msra.mxu0 0
    %1164 = vmatprep.subr.bf16.mxu0 0
    %1165 = vmatpush1.bf16.msra.mxu0 0
    %1166 = vmatprep.subr.bf16.mxu0 0
    %1167 = vmatpush1.bf16.msra.mxu0 0
    %1168 = vmatprep.subr.bf16.mxu0 0
    %1169 = vmatpush1.bf16.msra.mxu0 0
    %1170 = vmatprep.subr.bf16.mxu0 0
    %1171 = vmatpush1.bf16.msra.mxu0 0
    %1172 = vmatprep.mubr.bf16.mxu0 0
    %1173 = vmatmul.mubr.bf16.gmra.mrb[0].mxu0 %v1139
    %v1174 = vpop.f32.mrb[0].mxu0
    %v1175 = vadd.f32 0.0, %v1174
    %v1176 = vpop.f32.mrb[0].mxu0
    %v1177 = vadd.f32 0.0, %v1176
    %v1178 = vpop.f32.mrb[0].mxu0
    %v1179 = vpop.f32.mrb[0].mxu0
    %1180 = vdwg.mxu0
    %v1181 = vadd.f32 %v1136, %v1175
    %v1182 = vxor.u32 %v1181, 2147483648
    %v1183 = vmul.f32 %v1182, 1.442695
    %v1184 = vpow.pop %v1183
    %v1185 = vadd.f32 %v1184, 1.0
    %v1186 = vrcp.pop %v1185
    %v1187 = vmul.f32 1.0, %v1186
    %v1188 = vadd.f32 %v1137, %v1177
    %v1189 = vxor.u32 %v1188, 2147483648
    %v1190 = vmul.f32 %v1189, 1.442695
    %v1191 = vpow.pop %v1190
    %v1192 = vadd.f32 %v1191, 1.0
    %v1193 = vrcp.pop %v1192
    %v1194 = vmul.f32 1.0, %v1193
    %1195 = vmatprep.subr.bf16.mxu0 0
    %1196 = vmatpush1.bf16.msra.mxu0 %v663
    %1197 = vmatprep.subr.bf16.mxu0 0
    %1198 = vmatpush1.bf16.msra.mxu0 %v664
    %1199 = vmatprep.subr.bf16.mxu0 0
    %1200 = vmatpush1.bf16.msra.mxu0 %v665
    %1201 = vmatprep.subr.bf16.mxu0 0
    %1202 = vmatpush1.bf16.msra.mxu0 %v666
    %1203 = vmatprep.subr.bf16.mxu0 0
    %1204 = vmatpush1.bf16.msra.mxu0 %v667
    %1205 = vmatprep.subr.bf16.mxu0 0
    %1206 = vmatpush1.bf16.msra.mxu0 %v668
    %1207 = vmatprep.subr.bf16.mxu0 0
    %1208 = vmatpush1.bf16.msra.mxu0 %v669
    %1209 = vmatprep.subr.bf16.mxu0 0
    %1210 = vmatpush1.bf16.msra.mxu0 %v670
    %1211 = vmatprep.subr.bf16.mxu0 0
    %1212 = vmatpush1.bf16.msra.mxu0 0
    %1213 = vmatprep.subr.bf16.mxu0 0
    %1214 = vmatpush1.bf16.msra.mxu0 0
    %1215 = vmatprep.subr.bf16.mxu0 0
    %1216 = vmatpush1.bf16.msra.mxu0 0
    %1217 = vmatprep.subr.bf16.mxu0 0
    %1218 = vmatpush1.bf16.msra.mxu0 0
    %1219 = vmatprep.subr.bf16.mxu0 0
    %1220 = vmatpush1.bf16.msra.mxu0 0
    %1221 = vmatprep.subr.bf16.mxu0 0
    %1222 = vmatpush1.bf16.msra.mxu0 0
    %1223 = vmatprep.subr.bf16.mxu0 0
    %1224 = vmatpush1.bf16.msra.mxu0 0
    %1225 = vmatprep.subr.bf16.mxu0 0
    %1226 = vmatpush1.bf16.msra.mxu0 0
    %1227 = vmatprep.mubr.bf16.mxu0 0
    %1228 = vmatmul.mubr.bf16.gmra.mrb[0].mxu0 %v1139
    %v1229 = vpop.f32.mrb[0].mxu0
    %v1230 = vadd.f32 %v491, %v1229
    %v1231 = vpop.f32.mrb[0].mxu0
    %v1232 = vpop.f32.mrb[0].mxu0
    %v1233 = vpop.f32.mrb[0].mxu0
    %1234 = vdwg.mxu0
    %v1235 = vmul.f32 %v1187, %v1230
    %v1236 = vadd.f32 %v1138, %v1235
    %v1237 = vtanh.pop %v1236
    %v1238 = vsub.f32 1.0, %v1194
    %v1239 = vmul.f32 %v1238, %v1237
    %v1240 = vmul.f32 %v1194, %v1069
    %v1241 = vadd.f32 %v1239, %v1240
    %v1243 = vcombine.high %v1241, %v1241
    %v1245 = vunpack.c.l.s4 1966171168
    %v1246 = vunpack.c.0.s8 %v1245
    %v1247 = vlaneseq
    %v1248 = vshrl.u32 %v1247, 7
    %v1249 = vsub.s32 %v1246, %v1248
    %v1250 = vrot.slane %v1241, %v1249
    %v1252 = vunpack.c.l.s4 1966171168
    %v1253 = vunpack.c.0.s8 %v1252
    %v1254 = vlaneseq
    %v1255 = vshrl.u32 %v1254, 7
    %v1256 = vsub.s32 %v1253, %v1255
    %v1257 = vrot.slane %v1243, %v1256
    %v1258 = vcombine.high %v1250, %v1250
    %v1259 = vcombine.high %v1257, %v1257
    %v1261 = vunpack.c.l.s4 1966171168
    %v1262 = vunpack.c.0.s8 %v1261
    %v1263 = vlaneseq
    %v1264 = vshrl.u32 %v1263, 7
    %v1265 = vsub.s32 %v1262, %v1264
    %v1266 = vrot.slane %v1250, %v1265
    %v1268 = vunpack.c.l.s4 1966171168
    %v1269 = vunpack.c.0.s8 %v1268
    %v1270 = vlaneseq
    %v1271 = vshrl.u32 %v1270, 7
    %v1272 = vsub.s32 %v1269, %v1271
    %v1273 = vrot.slane %v1257, %v1272
    %v1275 = vunpack.c.l.s4 1966171168
    %v1276 = vunpack.c.0.s8 %v1275
    %v1277 = vlaneseq
    %v1278 = vshrl.u32 %v1277, 7
    %v1279 = vsub.s32 %v1276, %v1278
    %v1280 = vrot.slane %v1258, %v1279
    %v1282 = vunpack.c.l.s4 1966171168
    %v1283 = vunpack.c.0.s8 %v1282
    %v1284 = vlaneseq
    %v1285 = vshrl.u32 %v1284, 7
    %v1286 = vsub.s32 %v1283, %v1285
    %v1287 = vrot.slane %v1259, %v1286
    %v1288 = vcombine.high %v1266, %v1266
    %v1289 = vcombine.high %v1273, %v1273
    %v1290 = vcombine.high %v1280, %v1280
    %v1291 = vcombine.high %v1287, %v1287
    %1300 = vst [vmem:[#allocation11 + $0x3] sm:$0x1] %v1266
    %1301 = vst [vmem:[#allocation11 + $0xb] sm:$0x1] %v1280
    %1302 = vst [vmem:[#allocation11 + $0x13] sm:$0x1] %v1288
    %1303 = vst [vmem:[#allocation11 + $0x1b] sm:$0x1] %v1290
    %1304 = vst [vmem:[#allocation11 + $0x23] sm:$0x1] %v1273
    %1305 = vst [vmem:[#allocation11 + $0x2b] sm:$0x1] %v1287
    %1306 = vst [vmem:[#allocation11 + $0x33] sm:$0x1] %v1289
    %1307 = vst [vmem:[#allocation11 + $0x3b] sm:$0x1] %v1291
    %v1308 = vld [vmem:[#allocation2 + $0x60] sm:$0xff]
    %v1309 = vld [vmem:[#allocation2 + $0x68] sm:$0xff]
    %v1310 = vld [vmem:[#allocation2 + $0x70] sm:$0xff]
    %v1311 = vpack.c.bf16 %v1241, %v1241
    %1312 = vmatprep.subr.bf16.mxu0 %v545
    %1313 = vmatpush1.bf16.msra.mxu0 %v544
    %1314 = vmatprep.subr.bf16.mxu0 %v547
    %1315 = vmatpush1.bf16.msra.mxu0 %v546
    %1316 = vmatprep.subr.bf16.mxu0 %v549
    %1317 = vmatpush1.bf16.msra.mxu0 %v548
    %1318 = vmatprep.subr.bf16.mxu0 %v551
    %1319 = vmatpush1.bf16.msra.mxu0 %v550
    %1320 = vmatprep.subr.bf16.mxu0 %v553
    %1321 = vmatpush1.bf16.msra.mxu0 %v552
    %1322 = vmatprep.subr.bf16.mxu0 %v555
    %1323 = vmatpush1.bf16.msra.mxu0 %v554
    %1324 = vmatprep.subr.bf16.mxu0 %v557
    %1325 = vmatpush1.bf16.msra.mxu0 %v556
    %1326 = vmatprep.subr.bf16.mxu0 %v559
    %1327 = vmatpush1.bf16.msra.mxu0 %v558
    %1328 = vmatprep.subr.bf16.mxu0 0
    %1329 = vmatpush1.bf16.msra.mxu0 0
    %1330 = vmatprep.subr.bf16.mxu0 0
    %1331 = vmatpush1.bf16.msra.mxu0 0
    %1332 = vmatprep.subr.bf16.mxu0 0
    %1333 = vmatpush1.bf16.msra.mxu0 0
    %1334 = vmatprep.subr.bf16.mxu0 0
    %1335 = vmatpush1.bf16.msra.mxu0 0
    %1336 = vmatprep.subr.bf16.mxu0 0
    %1337 = vmatpush1.bf16.msra.mxu0 0
    %1338 = vmatprep.subr.bf16.mxu0 0
    %1339 = vmatpush1.bf16.msra.mxu0 0
    %1340 = vmatprep.subr.bf16.mxu0 0
    %1341 = vmatpush1.bf16.msra.mxu0 0
    %1342 = vmatprep.subr.bf16.mxu0 0
    %1343 = vmatpush1.bf16.msra.mxu0 0
    %1344 = vmatprep.mubr.bf16.mxu0 0
    %1345 = vmatmul.mubr.bf16.gmra.mrb[0].mxu0 %v1311
    %v1346 = vpop.f32.mrb[0].mxu0
    %v1347 = vadd.f32 0.0, %v1346
    %v1348 = vpop.f32.mrb[0].mxu0
    %v1349 = vadd.f32 0.0, %v1348
    %v1350 = vpop.f32.mrb[0].mxu0
    %v1351 = vpop.f32.mrb[0].mxu0
    %1352 = vdwg.mxu0
    %v1353 = vadd.f32 %v1308, %v1347
    %v1354 = vxor.u32 %v1353, 2147483648
    %v1355 = vmul.f32 %v1354, 1.442695
    %v1356 = vpow.pop %v1355
    %v1357 = vadd.f32 %v1356, 1.0
    %v1358 = vrcp.pop %v1357
    %v1359 = vmul.f32 1.0, %v1358
    %v1360 = vadd.f32 %v1309, %v1349
    %v1361 = vxor.u32 %v1360, 2147483648
    %v1362 = vmul.f32 %v1361, 1.442695
    %v1363 = vpow.pop %v1362
    %v1364 = vadd.f32 %v1363, 1.0
    %v1365 = vrcp.pop %v1364
    %v1366 = vmul.f32 1.0, %v1365
    %1367 = vmatprep.subr.bf16.mxu0 0
    %1368 = vmatpush1.bf16.msra.mxu0 %v663
    %1369 = vmatprep.subr.bf16.mxu0 0
    %1370 = vmatpush1.bf16.msra.mxu0 %v664
    %1371 = vmatprep.subr.bf16.mxu0 0
    %1372 = vmatpush1.bf16.msra.mxu0 %v665
    %1373 = vmatprep.subr.bf16.mxu0 0
    %1374 = vmatpush1.bf16.msra.mxu0 %v666
    %1375 = vmatprep.subr.bf16.mxu0 0
    %1376 = vmatpush1.bf16.msra.mxu0 %v667
    %1377 = vmatprep.subr.bf16.mxu0 0
    %1378 = vmatpush1.bf16.msra.mxu0 %v668
    %1379 = vmatprep.subr.bf16.mxu0 0
    %1380 = vmatpush1.bf16.msra.mxu0 %v669
    %1381 = vmatprep.subr.bf16.mxu0 0
    %1382 = vmatpush1.bf16.msra.mxu0 %v670
    %1383 = vmatprep.subr.bf16.mxu0 0
    %1384 = vmatpush1.bf16.msra.mxu0 0
    %1385 = vmatprep.subr.bf16.mxu0 0
    %1386 = vmatpush1.bf16.msra.mxu0 0
    %1387 = vmatprep.subr.bf16.mxu0 0
    %1388 = vmatpush1.bf16.msra.mxu0 0
    %1389 = vmatprep.subr.bf16.mxu0 0
    %1390 = vmatpush1.bf16.msra.mxu0 0
    %1391 = vmatprep.subr.bf16.mxu0 0
    %1392 = vmatpush1.bf16.msra.mxu0 0
    %1393 = vmatprep.subr.bf16.mxu0 0
    %1394 = vmatpush1.bf16.msra.mxu0 0
    %1395 = vmatprep.subr.bf16.mxu0 0
    %1396 = vmatpush1.bf16.msra.mxu0 0
    %1397 = vmatprep.subr.bf16.mxu0 0
    %1398 = vmatpush1.bf16.msra.mxu0 0
    %1399 = vmatprep.mubr.bf16.mxu0 0
    %1400 = vmatmul.mubr.bf16.gmra.mrb[0].mxu0 %v1311
    %v1401 = vpop.f32.mrb[0].mxu0
    %v1402 = vadd.f32 %v491, %v1401
    %v1403 = vpop.f32.mrb[0].mxu0
    %v1404 = vpop.f32.mrb[0].mxu0
    %v1405 = vpop.f32.mrb[0].mxu0
    %1406 = vdwg.mxu0
    %v1407 = vmul.f32 %v1359, %v1402
    %v1408 = vadd.f32 %v1310, %v1407
    %v1409 = vtanh.pop %v1408
    %v1410 = vsub.f32 1.0, %v1366
    %v1411 = vmul.f32 %v1410, %v1409
    %v1412 = vmul.f32 %v1366, %v1241
    %v1413 = vadd.f32 %v1411, %v1412
    %v1415 = vcombine.high %v1413, %v1413
    %v1417 = vunpack.c.l.s4 1966171168
    %v1418 = vunpack.c.0.s8 %v1417
    %v1419 = vlaneseq
    %v1420 = vshrl.u32 %v1419, 7
    %v1421 = vsub.s32 %v1418, %v1420
    %v1422 = vrot.slane %v1413, %v1421
    %v1424 = vunpack.c.l.s4 1966171168
    %v1425 = vunpack.c.0.s8 %v1424
    %v1426 = vlaneseq
    %v1427 = vshrl.u32 %v1426, 7
    %v1428 = vsub.s32 %v1425, %v1427
    %v1429 = vrot.slane %v1415, %v1428
    %v1430 = vcombine.high %v1422, %v1422
    %v1431 = vcombine.high %v1429, %v1429
    %v1433 = vunpack.c.l.s4 1966171168
    %v1434 = vunpack.c.0.s8 %v1433
    %v1435 = vlaneseq
    %v1436 = vshrl.u32 %v1435, 7
    %v1437 = vsub.s32 %v1434, %v1436
    %v1438 = vrot.slane %v1422, %v1437
    %v1440 = vunpack.c.l.s4 1966171168
    %v1441 = vunpack.c.0.s8 %v1440
    %v1442 = vlaneseq
    %v1443 = vshrl.u32 %v1442, 7
    %v1444 = vsub.s32 %v1441, %v1443
    %v1445 = vrot.slane %v1429, %v1444
    %v1447 = vunpack.c.l.s4 1966171168
    %v1448 = vunpack.c.0.s8 %v1447
    %v1449 = vlaneseq
    %v1450 = vshrl.u32 %v1449, 7
    %v1451 = vsub.s32 %v1448, %v1450
    %v1452 = vrot.slane %v1430, %v1451
    %v1454 = vunpack.c.l.s4 1966171168
    %v1455 = vunpack.c.0.s8 %v1454
    %v1456 = vlaneseq
    %v1457 = vshrl.u32 %v1456, 7
    %v1458 = vsub.s32 %v1455, %v1457
    %v1459 = vrot.slane %v1431, %v1458
    %v1460 = vcombine.high %v1438, %v1438
    %v1461 = vcombine.high %v1445, %v1445
    %v1462 = vcombine.high %v1452, %v1452
    %v1463 = vcombine.high %v1459, %v1459
    %1472 = vst [vmem:[#allocation11 + $0x4] sm:$0x1] %v1438
    %1473 = vst [vmem:[#allocation11 + $0xc] sm:$0x1] %v1452
    %1474 = vst [vmem:[#allocation11 + $0x14] sm:$0x1] %v1460
    %1475 = vst [vmem:[#allocation11 + $0x1c] sm:$0x1] %v1462
    %1476 = vst [vmem:[#allocation11 + $0x24] sm:$0x1] %v1445
    %1477 = vst [vmem:[#allocation11 + $0x2c] sm:$0x1] %v1459
    %1478 = vst [vmem:[#allocation11 + $0x34] sm:$0x1] %v1461
    %1479 = vst [vmem:[#allocation11 + $0x3c] sm:$0x1] %v1463
    %v1480 = vld [vmem:[#allocation2 + $0x78] sm:$0xff]
    %v1481 = vld [vmem:[#allocation2 + $0x80] sm:$0xff]
    %v1482 = vld [vmem:[#allocation2 + $0x88] sm:$0xff]
    %v1483 = vpack.c.bf16 %v1413, %v1413
    %1484 = vmatprep.subr.bf16.mxu0 %v545
    %1485 = vmatpush1.bf16.msra.mxu0 %v544
    %1486 = vmatprep.subr.bf16.mxu0 %v547
    %1487 = vmatpush1.bf16.msra.mxu0 %v546
    %1488 = vmatprep.subr.bf16.mxu0 %v549
    %1489 = vmatpush1.bf16.msra.mxu0 %v548
    %1490 = vmatprep.subr.bf16.mxu0 %v551
    %1491 = vmatpush1.bf16.msra.mxu0 %v550
    %1492 = vmatprep.subr.bf16.mxu0 %v553
    %1493 = vmatpush1.bf16.msra.mxu0 %v552
    %1494 = vmatprep.subr.bf16.mxu0 %v555
    %1495 = vmatpush1.bf16.msra.mxu0 %v554
    %1496 = vmatprep.subr.bf16.mxu0 %v557
    %1497 = vmatpush1.bf16.msra.mxu0 %v556
    %1498 = vmatprep.subr.bf16.mxu0 %v559
    %1499 = vmatpush1.bf16.msra.mxu0 %v558
    %1500 = vmatprep.subr.bf16.mxu0 0
    %1501 = vmatpush1.bf16.msra.mxu0 0
    %1502 = vmatprep.subr.bf16.mxu0 0
    %1503 = vmatpush1.bf16.msra.mxu0 0
    %1504 = vmatprep.subr.bf16.mxu0 0
    %1505 = vmatpush1.bf16.msra.mxu0 0
    %1506 = vmatprep.subr.bf16.mxu0 0
    %1507 = vmatpush1.bf16.msra.mxu0 0
    %1508 = vmatprep.subr.bf16.mxu0 0
    %1509 = vmatpush1.bf16.msra.mxu0 0
    %1510 = vmatprep.subr.bf16.mxu0 0
    %1511 = vmatpush1.bf16.msra.mxu0 0
    %1512 = vmatprep.subr.bf16.mxu0 0
    %1513 = vmatpush1.bf16.msra.mxu0 0
    %1514 = vmatprep.subr.bf16.mxu0 0
    %1515 = vmatpush1.bf16.msra.mxu0 0
    %1516 = vmatprep.mubr.bf16.mxu0 0
    %1517 = vmatmul.mubr.bf16.gmra.mrb[0].mxu0 %v1483
    %v1518 = vpop.f32.mrb[0].mxu0
    %v1519 = vadd.f32 0.0, %v1518
    %v1520 = vpop.f32.mrb[0].mxu0
    %v1521 = vadd.f32 0.0, %v1520
    %v1522 = vpop.f32.mrb[0].mxu0
    %v1523 = vpop.f32.mrb[0].mxu0
    %1524 = vdwg.mxu0
    %v1525 = vadd.f32 %v1480, %v1519
    %v1526 = vxor.u32 %v1525, 2147483648
    %v1527 = vmul.f32 %v1526, 1.442695
    %v1528 = vpow.pop %v1527
    %v1529 = vadd.f32 %v1528, 1.0
    %v1530 = vrcp.pop %v1529
    %v1531 = vmul.f32 1.0, %v1530
    %v1532 = vadd.f32 %v1481, %v1521
    %v1533 = vxor.u32 %v1532, 2147483648
    %v1534 = vmul.f32 %v1533, 1.442695
    %v1535 = vpow.pop %v1534
    %v1536 = vadd.f32 %v1535, 1.0
    %v1537 = vrcp.pop %v1536
    %v1538 = vmul.f32 1.0, %v1537
    %1539 = vmatprep.subr.bf16.mxu0 0
    %1540 = vmatpush1.bf16.msra.mxu0 %v663
    %1541 = vmatprep.subr.bf16.mxu0 0
    %1542 = vmatpush1.bf16.msra.mxu0 %v664
    %1543 = vmatprep.subr.bf16.mxu0 0
    %1544 = vmatpush1.bf16.msra.mxu0 %v665
    %1545 = vmatprep.subr.bf16.mxu0 0
    %1546 = vmatpush1.bf16.msra.mxu0 %v666
    %1547 = vmatprep.subr.bf16.mxu0 0
    %1548 = vmatpush1.bf16.msra.mxu0 %v667
    %1549 = vmatprep.subr.bf16.mxu0 0
    %1550 = vmatpush1.bf16.msra.mxu0 %v668
    %1551 = vmatprep.subr.bf16.mxu0 0
    %1552 = vmatpush1.bf16.msra.mxu0 %v669
    %1553 = vmatprep.subr.bf16.mxu0 0
    %1554 = vmatpush1.bf16.msra.mxu0 %v670
    %1555 = vmatprep.subr.bf16.mxu0 0
    %1556 = vmatpush1.bf16.msra.mxu0 0
    %1557 = vmatprep.subr.bf16.mxu0 0
    %1558 = vmatpush1.bf16.msra.mxu0 0
    %1559 = vmatprep.subr.bf16.mxu0 0
    %1560 = vmatpush1.bf16.msra.mxu0 0
    %1561 = vmatprep.subr.bf16.mxu0 0
    %1562 = vmatpush1.bf16.msra.mxu0 0
    %1563 = vmatprep.subr.bf16.mxu0 0
    %1564 = vmatpush1.bf16.msra.mxu0 0
    %1565 = vmatprep.subr.bf16.mxu0 0
    %1566 = vmatpush1.bf16.msra.mxu0 0
    %1567 = vmatprep.subr.bf16.mxu0 0
    %1568 = vmatpush1.bf16.msra.mxu0 0
    %1569 = vmatprep.subr.bf16.mxu0 0
    %1570 = vmatpush1.bf16.msra.mxu0 0
    %1571 = vmatprep.mubr.bf16.mxu0 0
    %1572 = vmatmul.mubr.bf16.gmra.mrb[0].mxu0 %v1483
    %v1573 = vpop.f32.mrb[0].mxu0
    %v1574 = vadd.f32 %v491, %v1573
    %v1575 = vpop.f32.mrb[0].mxu0
    %v1576 = vpop.f32.mrb[0].mxu0
    %v1577 = vpop.f32.mrb[0].mxu0
    %1578 = vdwg.mxu0
    %v1579 = vmul.f32 %v1531, %v1574
    %v1580 = vadd.f32 %v1482, %v1579
    %v1581 = vtanh.pop %v1580
    %v1582 = vsub.f32 1.0, %v1538
    %v1583 = vmul.f32 %v1582, %v1581
    %v1584 = vmul.f32 %v1538, %v1413
    %v1585 = vadd.f32 %v1583, %v1584
    %v1587 = vcombine.high %v1585, %v1585
    %v1589 = vunpack.c.l.s4 1966171168
    %v1590 = vunpack.c.0.s8 %v1589
    %v1591 = vlaneseq
    %v1592 = vshrl.u32 %v1591, 7
    %v1593 = vsub.s32 %v1590, %v1592
    %v1594 = vrot.slane %v1585, %v1593
    %v1596 = vunpack.c.l.s4 1966171168
    %v1597 = vunpack.c.0.s8 %v1596
    %v1598 = vlaneseq
    %v1599 = vshrl.u32 %v1598, 7
    %v1600 = vsub.s32 %v1597, %v1599
    %v1601 = vrot.slane %v1587, %v1600
    %v1602 = vcombine.high %v1594, %v1594
    %v1603 = vcombine.high %v1601, %v1601
    %v1605 = vunpack.c.l.s4 1966171168
    %v1606 = vunpack.c.0.s8 %v1605
    %v1607 = vlaneseq
    %v1608 = vshrl.u32 %v1607, 7
    %v1609 = vsub.s32 %v1606, %v1608
    %v1610 = vrot.slane %v1594, %v1609
    %v1612 = vunpack.c.l.s4 1966171168
    %v1613 = vunpack.c.0.s8 %v1612
    %v1614 = vlaneseq
    %v1615 = vshrl.u32 %v1614, 7
    %v1616 = vsub.s32 %v1613, %v1615
    %v1617 = vrot.slane %v1601, %v1616
    %v1619 = vunpack.c.l.s4 1966171168
    %v1620 = vunpack.c.0.s8 %v1619
    %v1621 = vlaneseq
    %v1622 = vshrl.u32 %v1621, 7
    %v1623 = vsub.s32 %v1620, %v1622
    %v1624 = vrot.slane %v1602, %v1623
    %v1626 = vunpack.c.l.s4 1966171168
    %v1627 = vunpack.c.0.s8 %v1626
    %v1628 = vlaneseq
    %v1629 = vshrl.u32 %v1628, 7
    %v1630 = vsub.s32 %v1627, %v1629
    %v1631 = vrot.slane %v1603, %v1630
    %v1632 = vcombine.high %v1610, %v1610
    %v1633 = vcombine.high %v1617, %v1617
    %v1634 = vcombine.high %v1624, %v1624
    %v1635 = vcombine.high %v1631, %v1631
    %1644 = vst [vmem:[#allocation11 + $0x5] sm:$0x1] %v1610
    %1645 = vst [vmem:[#allocation11 + $0xd] sm:$0x1] %v1624
    %1646 = vst [vmem:[#allocation11 + $0x15] sm:$0x1] %v1632
    %1647 = vst [vmem:[#allocation11 + $0x1d] sm:$0x1] %v1634
    %1648 = vst [vmem:[#allocation11 + $0x25] sm:$0x1] %v1617
    %1649 = vst [vmem:[#allocation11 + $0x2d] sm:$0x1] %v1631
    %1650 = vst [vmem:[#allocation11 + $0x35] sm:$0x1] %v1633
    %1651 = vst [vmem:[#allocation11 + $0x3d] sm:$0x1] %v1635
    %v1652 = vld [vmem:[#allocation2 + $0x90] sm:$0xff]
    %v1653 = vld [vmem:[#allocation2 + $0x98] sm:$0xff]
    %v1654 = vld [vmem:[#allocation2 + $0xa0] sm:$0xff]
    %v1655 = vpack.c.bf16 %v1585, %v1585
    %1656 = vmatprep.subr.bf16.mxu0 %v545
    %1657 = vmatpush1.bf16.msra.mxu0 %v544
    %1658 = vmatprep.subr.bf16.mxu0 %v547
    %1659 = vmatpush1.bf16.msra.mxu0 %v546
    %1660 = vmatprep.subr.bf16.mxu0 %v549
    %1661 = vmatpush1.bf16.msra.mxu0 %v548
    %1662 = vmatprep.subr.bf16.mxu0 %v551
    %1663 = vmatpush1.bf16.msra.mxu0 %v550
    %1664 = vmatprep.subr.bf16.mxu0 %v553
    %1665 = vmatpush1.bf16.msra.mxu0 %v552
    %1666 = vmatprep.subr.bf16.mxu0 %v555
    %1667 = vmatpush1.bf16.msra.mxu0 %v554
    %1668 = vmatprep.subr.bf16.mxu0 %v557
    %1669 = vmatpush1.bf16.msra.mxu0 %v556
    %1670 = vmatprep.subr.bf16.mxu0 %v559
    %1671 = vmatpush1.bf16.msra.mxu0 %v558
    %1672 = vmatprep.subr.bf16.mxu0 0
    %1673 = vmatpush1.bf16.msra.mxu0 0
    %1674 = vmatprep.subr.bf16.mxu0 0
    %1675 = vmatpush1.bf16.msra.mxu0 0
    %1676 = vmatprep.subr.bf16.mxu0 0
    %1677 = vmatpush1.bf16.msra.mxu0 0
    %1678 = vmatprep.subr.bf16.mxu0 0
    %1679 = vmatpush1.bf16.msra.mxu0 0
    %1680 = vmatprep.subr.bf16.mxu0 0
    %1681 = vmatpush1.bf16.msra.mxu0 0
    %1682 = vmatprep.subr.bf16.mxu0 0
    %1683 = vmatpush1.bf16.msra.mxu0 0
    %1684 = vmatprep.subr.bf16.mxu0 0
    %1685 = vmatpush1.bf16.msra.mxu0 0
    %1686 = vmatprep.subr.bf16.mxu0 0
    %1687 = vmatpush1.bf16.msra.mxu0 0
    %1688 = vmatprep.mubr.bf16.mxu0 0
    %1689 = vmatmul.mubr.bf16.gmra.mrb[0].mxu0 %v1655
    %v1690 = vpop.f32.mrb[0].mxu0
    %v1691 = vadd.f32 0.0, %v1690
    %v1692 = vpop.f32.mrb[0].mxu0
    %v1693 = vadd.f32 0.0, %v1692
    %v1694 = vpop.f32.mrb[0].mxu0
    %v1695 = vpop.f32.mrb[0].mxu0
    %1696 = vdwg.mxu0
    %v1697 = vadd.f32 %v1652, %v1691
    %v1698 = vxor.u32 %v1697, 2147483648
    %v1699 = vmul.f32 %v1698, 1.442695
    %v1700 = vpow.pop %v1699
    %v1701 = vadd.f32 %v1700, 1.0
    %v1702 = vrcp.pop %v1701
    %v1703 = vmul.f32 1.0, %v1702
    %v1704 = vadd.f32 %v1653, %v1693
    %v1705 = vxor.u32 %v1704, 2147483648
    %v1706 = vmul.f32 %v1705, 1.442695
    %v1707 = vpow.pop %v1706
    %v1708 = vadd.f32 %v1707, 1.0
    %v1709 = vrcp.pop %v1708
    %v1710 = vmul.f32 1.0, %v1709
    %1711 = vmatprep.subr.bf16.mxu0 0
    %1712 = vmatpush1.bf16.msra.mxu0 %v663
    %1713 = vmatprep.subr.bf16.mxu0 0
    %1714 = vmatpush1.bf16.msra.mxu0 %v664
    %1715 = vmatprep.subr.bf16.mxu0 0
    %1716 = vmatpush1.bf16.msra.mxu0 %v665
    %1717 = vmatprep.subr.bf16.mxu0 0
    %1718 = vmatpush1.bf16.msra.mxu0 %v666
    %1719 = vmatprep.subr.bf16.mxu0 0
    %1720 = vmatpush1.bf16.msra.mxu0 %v667
    %1721 = vmatprep.subr.bf16.mxu0 0
    %1722 = vmatpush1.bf16.msra.mxu0 %v668
    %1723 = vmatprep.subr.bf16.mxu0 0
    %1724 = vmatpush1.bf16.msra.mxu0 %v669
    %1725 = vmatprep.subr.bf16.mxu0 0
    %1726 = vmatpush1.bf16.msra.mxu0 %v670
    %1727 = vmatprep.subr.bf16.mxu0 0
    %1728 = vmatpush1.bf16.msra.mxu0 0
    %1729 = vmatprep.subr.bf16.mxu0 0
    %1730 = vmatpush1.bf16.msra.mxu0 0
    %1731 = vmatprep.subr.bf16.mxu0 0
    %1732 = vmatpush1.bf16.msra.mxu0 0
    %1733 = vmatprep.subr.bf16.mxu0 0
    %1734 = vmatpush1.bf16.msra.mxu0 0
    %1735 = vmatprep.subr.bf16.mxu0 0
    %1736 = vmatpush1.bf16.msra.mxu0 0
    %1737 = vmatprep.subr.bf16.mxu0 0
    %1738 = vmatpush1.bf16.msra.mxu0 0
    %1739 = vmatprep.subr.bf16.mxu0 0
    %1740 = vmatpush1.bf16.msra.mxu0 0
    %1741 = vmatprep.subr.bf16.mxu0 0
    %1742 = vmatpush1.bf16.msra.mxu0 0
    %1743 = vmatprep.mubr.bf16.mxu0 0
    %1744 = vmatmul.mubr.bf16.gmra.mrb[0].mxu0 %v1655
    %v1745 = vpop.f32.mrb[0].mxu0
    %v1746 = vadd.f32 %v491, %v1745
    %v1747 = vpop.f32.mrb[0].mxu0
    %v1748 = vpop.f32.mrb[0].mxu0
    %v1749 = vpop.f32.mrb[0].mxu0
    %1750 = vdwg.mxu0
    %v1751 = vmul.f32 %v1703, %v1746
    %v1752 = vadd.f32 %v1654, %v1751
    %v1753 = vtanh.pop %v1752
    %v1754 = vsub.f32 1.0, %v1710
    %v1755 = vmul.f32 %v1754, %v1753
    %v1756 = vmul.f32 %v1710, %v1585
    %v1757 = vadd.f32 %v1755, %v1756
    %v1759 = vcombine.high %v1757, %v1757
    %v1761 = vunpack.c.l.s4 1966171168
    %v1762 = vunpack.c.0.s8 %v1761
    %v1763 = vlaneseq
    %v1764 = vshrl.u32 %v1763, 7
    %v1765 = vsub.s32 %v1762, %v1764
    %v1766 = vrot.slane %v1757, %v1765
    %v1768 = vunpack.c.l.s4 1966171168
    %v1769 = vunpack.c.0.s8 %v1768
    %v1770 = vlaneseq
    %v1771 = vshrl.u32 %v1770, 7
    %v1772 = vsub.s32 %v1769, %v1771
    %v1773 = vrot.slane %v1759, %v1772
    %v1774 = vcombine.high %v1766, %v1766
    %v1775 = vcombine.high %v1773, %v1773
    %v1777 = vunpack.c.l.s4 1966171168
    %v1778 = vunpack.c.0.s8 %v1777
    %v1779 = vlaneseq
    %v1780 = vshrl.u32 %v1779, 7
    %v1781 = vsub.s32 %v1778, %v1780
    %v1782 = vrot.slane %v1766, %v1781
    %v1784 = vunpack.c.l.s4 1966171168
    %v1785 = vunpack.c.0.s8 %v1784
    %v1786 = vlaneseq
    %v1787 = vshrl.u32 %v1786, 7
    %v1788 = vsub.s32 %v1785, %v1787
    %v1789 = vrot.slane %v1773, %v1788
    %v1791 = vunpack.c.l.s4 1966171168
    %v1792 = vunpack.c.0.s8 %v1791
    %v1793 = vlaneseq
    %v1794 = vshrl.u32 %v1793, 7
    %v1795 = vsub.s32 %v1792, %v1794
    %v1796 = vrot.slane %v1774, %v1795
    %v1798 = vunpack.c.l.s4 1966171168
    %v1799 = vunpack.c.0.s8 %v1798
    %v1800 = vlaneseq
    %v1801 = vshrl.u32 %v1800, 7
    %v1802 = vsub.s32 %v1799, %v1801
    %v1803 = vrot.slane %v1775, %v1802
    %v1804 = vcombine.high %v1782, %v1782
    %v1805 = vcombine.high %v1789, %v1789
    %v1806 = vcombine.high %v1796, %v1796
    %v1807 = vcombine.high %v1803, %v1803
    %1816 = vst [vmem:[#allocation11 + $0x6] sm:$0x1] %v1782
    %1817 = vst [vmem:[#allocation11 + $0xe] sm:$0x1] %v1796
    %1818 = vst [vmem:[#allocation11 + $0x16] sm:$0x1] %v1804
    %1819 = vst [vmem:[#allocation11 + $0x1e] sm:$0x1] %v1806
    %1820 = vst [vmem:[#allocation11 + $0x26] sm:$0x1] %v1789
    %1821 = vst [vmem:[#allocation11 + $0x2e] sm:$0x1] %v1803
    %1822 = vst [vmem:[#allocation11 + $0x36] sm:$0x1] %v1805
    %1823 = vst [vmem:[#allocation11 + $0x3e] sm:$0x1] %v1807
    %v1824 = vld [vmem:[#allocation2 + $0xa8] sm:$0xff]
    %v1825 = vld [vmem:[#allocation2 + $0xb0] sm:$0xff]
    %v1826 = vld [vmem:[#allocation2 + $0xb8] sm:$0xff]
    %v1827 = vpack.c.bf16 %v1757, %v1757
    %1828 = vmatprep.subr.bf16.mxu0 %v545
    %1829 = vmatpush1.bf16.msra.mxu0 %v544
    %1830 = vmatprep.subr.bf16.mxu0 %v547
    %1831 = vmatpush1.bf16.msra.mxu0 %v546
    %1832 = vmatprep.subr.bf16.mxu0 %v549
    %1833 = vmatpush1.bf16.msra.mxu0 %v548
    %1834 = vmatprep.subr.bf16.mxu0 %v551
    %1835 = vmatpush1.bf16.msra.mxu0 %v550
    %1836 = vmatprep.subr.bf16.mxu0 %v553
    %1837 = vmatpush1.bf16.msra.mxu0 %v552
    %1838 = vmatprep.subr.bf16.mxu0 %v555
    %1839 = vmatpush1.bf16.msra.mxu0 %v554
    %1840 = vmatprep.subr.bf16.mxu0 %v557
    %1841 = vmatpush1.bf16.msra.mxu0 %v556
    %1842 = vmatprep.subr.bf16.mxu0 %v559
    %1843 = vmatpush1.bf16.msra.mxu0 %v558
    %1844 = vmatprep.subr.bf16.mxu0 0
    %1845 = vmatpush1.bf16.msra.mxu0 0
    %1846 = vmatprep.subr.bf16.mxu0 0
    %1847 = vmatpush1.bf16.msra.mxu0 0
    %1848 = vmatprep.subr.bf16.mxu0 0
    %1849 = vmatpush1.bf16.msra.mxu0 0
    %1850 = vmatprep.subr.bf16.mxu0 0
    %1851 = vmatpush1.bf16.msra.mxu0 0
    %1852 = vmatprep.subr.bf16.mxu0 0
    %1853 = vmatpush1.bf16.msra.mxu0 0
    %1854 = vmatprep.subr.bf16.mxu0 0
    %1855 = vmatpush1.bf16.msra.mxu0 0
    %1856 = vmatprep.subr.bf16.mxu0 0
    %1857 = vmatpush1.bf16.msra.mxu0 0
    %1858 = vmatprep.subr.bf16.mxu0 0
    %1859 = vmatpush1.bf16.msra.mxu0 0
    %1860 = vmatprep.mubr.bf16.mxu0 0
    %1861 = vmatmul.mubr.bf16.gmra.mrb[0].mxu0 %v1827
    %v1862 = vpop.f32.mrb[0].mxu0
    %v1863 = vadd.f32 0.0, %v1862
    %v1864 = vpop.f32.mrb[0].mxu0
    %v1865 = vadd.f32 0.0, %v1864
    %v1866 = vpop.f32.mrb[0].mxu0
    %v1867 = vpop.f32.mrb[0].mxu0
    %1868 = vdwg.mxu0
    %v1869 = vadd.f32 %v1824, %v1863
    %v1870 = vxor.u32 %v1869, 2147483648
    %v1871 = vmul.f32 %v1870, 1.442695
    %v1872 = vpow.pop %v1871
    %v1873 = vadd.f32 %v1872, 1.0
    %v1874 = vrcp.pop %v1873
    %v1875 = vmul.f32 1.0, %v1874
    %v1876 = vadd.f32 %v1825, %v1865
    %v1877 = vxor.u32 %v1876, 2147483648
    %v1878 = vmul.f32 %v1877, 1.442695
    %v1879 = vpow.pop %v1878
    %v1880 = vadd.f32 %v1879, 1.0
    %v1881 = vrcp.pop %v1880
    %v1882 = vmul.f32 1.0, %v1881
    %1883 = vmatprep.subr.bf16.mxu0 0
    %1884 = vmatpush1.bf16.msra.mxu0 %v663
    %1885 = vmatprep.subr.bf16.mxu0 0
    %1886 = vmatpush1.bf16.msra.mxu0 %v664
    %1887 = vmatprep.subr.bf16.mxu0 0
    %1888 = vmatpush1.bf16.msra.mxu0 %v665
    %1889 = vmatprep.subr.bf16.mxu0 0
    %1890 = vmatpush1.bf16.msra.mxu0 %v666
    %1891 = vmatprep.subr.bf16.mxu0 0
    %1892 = vmatpush1.bf16.msra.mxu0 %v667
    %1893 = vmatprep.subr.bf16.mxu0 0
    %1894 = vmatpush1.bf16.msra.mxu0 %v668
    %1895 = vmatprep.subr.bf16.mxu0 0
    %1896 = vmatpush1.bf16.msra.mxu0 %v669
    %1897 = vmatprep.subr.bf16.mxu0 0
    %1898 = vmatpush1.bf16.msra.mxu0 %v670
    %1899 = vmatprep.subr.bf16.mxu0 0
    %1900 = vmatpush1.bf16.msra.mxu0 0
    %1901 = vmatprep.subr.bf16.mxu0 0
    %1902 = vmatpush1.bf16.msra.mxu0 0
    %1903 = vmatprep.subr.bf16.mxu0 0
    %1904 = vmatpush1.bf16.msra.mxu0 0
    %1905 = vmatprep.subr.bf16.mxu0 0
    %1906 = vmatpush1.bf16.msra.mxu0 0
    %1907 = vmatprep.subr.bf16.mxu0 0
    %1908 = vmatpush1.bf16.msra.mxu0 0
    %1909 = vmatprep.subr.bf16.mxu0 0
    %1910 = vmatpush1.bf16.msra.mxu0 0
    %1911 = vmatprep.subr.bf16.mxu0 0
    %1912 = vmatpush1.bf16.msra.mxu0 0
    %1913 = vmatprep.subr.bf16.mxu0 0
    %1914 = vmatpush1.bf16.msra.mxu0 0
    %1915 = vmatprep.mubr.bf16.mxu0 0
    %1916 = vmatmul.mubr.bf16.gmra.mrb[0].mxu0 %v1827
    %v1917 = vpop.f32.mrb[0].mxu0
    %v1918 = vadd.f32 %v491, %v1917
    %v1919 = vpop.f32.mrb[0].mxu0
    %v1920 = vpop.f32.mrb[0].mxu0
    %v1921 = vpop.f32.mrb[0].mxu0
    %1922 = vdwg.mxu0
    %v1923 = vmul.f32 %v1875, %v1918
    %v1924 = vadd.f32 %v1826, %v1923
    %v1925 = vtanh.pop %v1924
    %v1926 = vsub.f32 1.0, %v1882
    %v1927 = vmul.f32 %v1926, %v1925
    %v1928 = vmul.f32 %v1882, %v1757
    %v1929 = vadd.f32 %v1927, %v1928
    %v1931 = vcombine.high %v1929, %v1929
    %v1933 = vunpack.c.l.s4 1966171168
    %v1934 = vunpack.c.0.s8 %v1933
    %v1935 = vlaneseq
    %v1936 = vshrl.u32 %v1935, 7
    %v1937 = vsub.s32 %v1934, %v1936
    %v1938 = vrot.slane %v1929, %v1937
    %v1940 = vunpack.c.l.s4 1966171168
    %v1941 = vunpack.c.0.s8 %v1940
    %v1942 = vlaneseq
    %v1943 = vshrl.u32 %v1942, 7
    %v1944 = vsub.s32 %v1941, %v1943
    %v1945 = vrot.slane %v1931, %v1944
    %v1946 = vcombine.high %v1938, %v1938
    %v1947 = vcombine.high %v1945, %v1945
    %v1949 = vunpack.c.l.s4 1966171168
    %v1950 = vunpack.c.0.s8 %v1949
    %v1951 = vlaneseq
    %v1952 = vshrl.u32 %v1951, 7
    %v1953 = vsub.s32 %v1950, %v1952
    %v1954 = vrot.slane %v1938, %v1953
    %v1956 = vunpack.c.l.s4 1966171168
    %v1957 = vunpack.c.0.s8 %v1956
    %v1958 = vlaneseq
    %v1959 = vshrl.u32 %v1958, 7
    %v1960 = vsub.s32 %v1957, %v1959
    %v1961 = vrot.slane %v1945, %v1960
    %v1963 = vunpack.c.l.s4 1966171168
    %v1964 = vunpack.c.0.s8 %v1963
    %v1965 = vlaneseq
    %v1966 = vshrl.u32 %v1965, 7
    %v1967 = vsub.s32 %v1964, %v1966
    %v1968 = vrot.slane %v1946, %v1967
    %v1970 = vunpack.c.l.s4 1966171168
    %v1971 = vunpack.c.0.s8 %v1970
    %v1972 = vlaneseq
    %v1973 = vshrl.u32 %v1972, 7
    %v1974 = vsub.s32 %v1971, %v1973
    %v1975 = vrot.slane %v1947, %v1974
    %v1976 = vcombine.high %v1954, %v1954
    %v1977 = vcombine.high %v1961, %v1961
    %v1978 = vcombine.high %v1968, %v1968
    %v1979 = vcombine.high %v1975, %v1975
    %1988 = vst [vmem:[#allocation11 + $0x7] sm:$0x1] %v1954
    %1989 = vst [vmem:[#allocation11 + $0xf] sm:$0x1] %v1968
    %1990 = vst [vmem:[#allocation11 + $0x17] sm:$0x1] %v1976
    %1991 = vst [vmem:[#allocation11 + $0x1f] sm:$0x1] %v1978
    %1992 = vst [vmem:[#allocation11 + $0x27] sm:$0x1] %v1961
    %1993 = vst [vmem:[#allocation11 + $0x2f] sm:$0x1] %v1975
    %1994 = vst [vmem:[#allocation11 + $0x37] sm:$0x1] %v1977
    %1995 = vst [vmem:[#allocation11 + $0x3f] sm:$0x1] %v1979
    %1996 = vst [vmem:[#allocation12] sm:$0xff] %v1929
    // Predicated region
    $region42: #{tpu_custom_call.1} parent=1 // pred_check
      _
    $region43: #{tpu_custom_call.1} parent=1 // pred_check_branch
      %1998 = sbr.rel (0) target = $region45
    $region44: #{tpu_custom_call.1} parent=1 // pred_region
      %s2000 = ssub.s32 1024, 1024
      %2001 = vsyncadd [#allocation5], %s2000
      %s2002 = sshll.u32 [#allocation11], 4
      %s2003 = int_to_ptr.vmem [resolvable:$true] %s2002
      %2008 = dma.vmem_to_hbm [thread:$0]  %s2003, 1024, %s6, [#allocation5], 128, 128, 8
    $region45: #{tpu_custom_call.1} parent=1 // pred_fallthru
      _
    // Predicated region
    $region46: #{tpu_custom_call.1} parent=1 // pred_check
      _
    $region47: #{tpu_custom_call.1} parent=1 // pred_check_branch
      %2010 = sbr.rel (0) target = $region49
    $region48: #{tpu_custom_call.1} parent=1 // pred_region
      %s2012 = ssub.s32 128, 128
      %2013 = vsyncadd [#allocation13], %s2012
      %s2015 = sshll.u32 [#allocation12], 4
      %s2016 = int_to_ptr.vmem [resolvable:$true] %s2015
      %2018 = dma.vmem_to_hbm [thread:$0]  %s2016, 128, %s7, [#allocation13]
    $region49: #{tpu_custom_call.1} parent=1 // pred_fallthru
      _
    // Predicated region
    $region50: #{tpu_custom_call.1} parent=1 // pred_check
      _
    $region51: #{tpu_custom_call.1} parent=1 // pred_check_branch
      %2020 = sbr.rel (0) target = $region53
    $region52: #{tpu_custom_call.1} parent=1 // pred_region
      %2021 = dma.done [#allocation5], 1024
    $region53: #{tpu_custom_call.1} parent=1 // pred_fallthru
      _
    // Predicated region
    $region54: #{tpu_custom_call.1} parent=1 // pred_check
      _
    $region55: #{tpu_custom_call.1} parent=1 // pred_check_branch
      %2023 = sbr.rel (0) target = $region57
    $region56: #{tpu_custom_call.1} parent=1 // pred_region
      %2024 = dma.done [#allocation13], 128
    $region57: #{tpu_custom_call.1} parent=1 // pred_fallthru
      _
    %2025 = vsyncpa [#allocation4], 1
    %2026 = vsyncpa [#allocation7], 1
    %2027 = vsyncpa [#allocation10], 1
    %2028 = vsyncpa [#allocation5], 1
    %2029 = vsyncpa [#allocation13], 1

</llo_original>
